<compile_context>
chip_gen: v6e
topology: v6e:2x2x1
jax: 0.10.0
libtpu: 0.0.40
codegen_flags: <defaults>
</compile_context>

<pallas_src>
import functools
import numpy as np
import jax
import jax.numpy as jnp
from jax.experimental import pallas as pl
from jax.experimental.pallas import tpu as pltpu

# ---------------- model config (matches NICE(..., coupling_type='additive')) -
D = 64           # in_out_dim
MID = 32         # mid_dim
HIDDEN = 2       # hidden layers -> linears: D/2->MID, (HIDDEN-1)x MID->MID, MID->D/2
COUPLING = 4     # number of coupling layers, mask_config = i % 2
EPS = 1e-5
HALF = D // 2
NHID = COUPLING * (HIDDEN - 1)


# ------------------------------- Pallas kernel -------------------------------
def nice_kernel(x_ref, w0_ref, b0_ref, w1_ref, b1_ref, w2_ref, b2_ref,
                mult_ref, out_ref):
    x = x_ref[...]                                   # (block_b, D), interleaved

    # Unrolled coupling layers, applied directly on the interleaved layout via
    # the zero-padded weight packing (exactly equivalent to the masked update).
    for i in range(COUPLING):
        h = jnp.dot(x, w0_ref[i], preferred_element_type=jnp.float32) + b0_ref[i]
        h = jnp.maximum(h, 0.0)
        for j in range(HIDDEN - 1):
            li = i * (HIDDEN - 1) + j
            h = jnp.dot(h, w1_ref[li], preferred_element_type=jnp.float32) + b1_ref[li]
            h = jnp.maximum(h, 0.0)
        x = x + (jnp.dot(h, w2_ref[i], preferred_element_type=jnp.float32) + b2_ref[i])

    # Scaling layer (multiplier precomputed in the wrapper) + gaussian prior
    # log-density reduced over features.  The per-element normal constant and
    # log_det_J are hoisted out of the kernel and added by the wrapper.
    z = x * mult_ref[...]                            # (block_b, D), 64-lane dense
    out_ref[...] = -0.5 * jnp.sum(z * z, axis=1, keepdims=True)


# ------------------------- parameter packing (one-time) ----------------------
def pack_params(params):
    """Pack original-layout params into the interleaved kernel layout."""
    w0s, b0s, w1s, b1s, w2s, b2s, scale = params

    w0_full = jnp.zeros((COUPLING, D, MID), jnp.float32)
    w2_full = jnp.zeros((COUPLING, MID, D), jnp.float32)
    b2_full = jnp.zeros((COUPLING, D), jnp.float32)
    for i in range(COUPLING):
        mc = i % 2
        w0_full = w0_full.at[i, mc::2, :].set(w0s[i])          # MLP input = x1
        w2_full = w2_full.at[i, :, (1 - mc)::2].set(w2s[i])    # update x2 only
        b2_full = b2_full.at[i, (1 - mc)::2].set(b2s[i, 0])

    b0_full = b0s[:, 0, :]                                     # (COUPLING, MID)
    w1_full = w1s.reshape(NHID, MID, MID)
    b1_full = b1s.reshape(NHID, MID)

    mult = jnp.exp(scale) + EPS                                # (1, D)
    # log_det_J (scaling + dequant) + per-feature normal constant, all scalar.
    lp_const = (jnp.sum(scale) + EPS
                - np.log(256.0) * D
                - 0.5 * np.log(2.0 * np.pi) * D)
    return w0_full, b0_full, w1_full, b1_full, w2_full, b2_full, mult, lp_const


# --------------------------------- wrapper ------------------------------------
@functools.partial(jax.jit, static_argnames=("block_b",))
def nice_forward_pallas(x, params, block_b=128):
    """x: (B, D) float32.  Returns per-sample log-likelihood, shape (B,)."""
    w0, b0, w1, b1, w2, b2, mult, lp_const = pack_params(params)

    bsz = x.shape[0]
    nblk = pl.cdiv(bsz, block_b)
    bpad = nblk * block_b
    if bpad != bsz:
        x = jnp.pad(x, ((0, bpad - bsz), (0, 0)))

    grid_spec = pltpu.PrefetchScalarGridSpec(
        num_scalar_prefetch=0,
        grid=(nblk,),
        in_specs=[
            pl.BlockSpec((block_b, D), lambda i: (i, 0)),        # x tile
            pl.BlockSpec((COUPLING, D, MID), lambda i: (0, 0, 0)),
            pl.BlockSpec((COUPLING, MID), lambda i: (0, 0)),
            pl.BlockSpec((NHID, MID, MID), lambda i: (0, 0, 0)),
            pl.BlockSpec((NHID, MID), lambda i: (0, 0)),
            pl.BlockSpec((COUPLING, MID, D), lambda i: (0, 0, 0)),
            pl.BlockSpec((COUPLING, D), lambda i: (0, 0)),
            pl.BlockSpec((1, D), lambda i: (0, 0)),              # scaling mult
        ],
        out_specs=pl.BlockSpec((block_b, 1), lambda i: (i, 0)),
    )

    out = pl.pallas_call(
        nice_kernel,
        out_shape=jax.ShapeDtypeStruct((bpad, 1), jnp.float32),
        grid_spec=grid_spec,
        compiler_params=pltpu.CompilerParams(
            dimension_semantics=("parallel",)),      # 2-TC sharding on v7x
    )(x, w0, b0, w1, b1, w2, b2, mult)

    return out[:bsz, 0] + lp_const


# ------------------------- pure-JAX reference (checks) -----------------------
def nice_forward_ref(x, params):
    w0s, b0s, w1s, b1s, w2s, b2s, scale = params
    h, w = x.shape
    for i in range(COUPLING):
        mc = i % 2
        x1 = x[:, mc::2]
        x2 = x[:, (1 - mc)::2]
        hid = jax.nn.relu(x1 @ w0s[i] + b0s[i, 0])
        for j in range(HIDDEN - 1):
            hid = jax.nn.relu(hid @ w1s[i, j] + b1s[i, j, 0])
        x2 = x2 + (hid @ w2s[i] + b2s[i, 0])
        if mc:
            x = jnp.stack((x2, x1), axis=2).reshape(h, w)
        else:
            x = jnp.stack((x1, x2), axis=2).reshape(h, w)
    z = x * (jnp.exp(scale) + EPS)
    log_det_j = jnp.sum(scale) + EPS - np.log(256.0) * w
    lp = jnp.sum(-0.5 * z * z - 0.5 * np.log(2.0 * np.pi), axis=1)
    return lp + log_det_j


# ------------------------------ parameter init --------------------------------
def init_params(key):
    ks = jax.random.split(key, 7)
    lim0 = 1.0 / np.sqrt(HALF)
    lim1 = 1.0 / np.sqrt(MID)
    # Weights stored as (in, out) so the kernel can use jnp.dot directly.
    w0s = jax.random.uniform(ks[0], (COUPLING, HALF, MID), jnp.float32, -lim0, lim0)
    b0s = jax.random.uniform(ks[1], (COUPLING, 1, MID), jnp.float32, -lim0, lim0)
    w1s = jax.random.uniform(ks[2], (COUPLING, HIDDEN - 1, MID, MID), jnp.float32, -lim1, lim1)
    b1s = jax.random.uniform(ks[3], (COUPLING, HIDDEN - 1, 1, MID), jnp.float32, -lim1, lim1)
    w2s = jax.random.uniform(ks[4], (COUPLING, MID, HALF), jnp.float32, -lim1, lim1)
    b2s = jax.random.uniform(ks[5], (COUPLING, 1, HALF), jnp.float32, -lim1, lim1)
    scale = jnp.zeros((1, D), jnp.float32)  # nn.Parameter(torch.zeros((1, dim)))
    return (w0s, b0s, w1s, b1s, w2s, b2s, scale)


# ------------------------------------ main ------------------------------------
if __name__ == "__main__":
    key = jax.random.PRNGKey(0)
    k_x, k_p = jax.random.split(key)
    BATCH = 512                                   # grid of 4 steps at block_b=128
    x = jax.random.uniform(k_x, (BATCH, D), jnp.float32)
    params = init_params(k_p)

    out = jax.block_until_ready(nice_forward_pallas(x, params))
    ref = jax.block_until_ready(nice_forward_ref(x, params))

    np.testing.assert_allclose(np.asarray(out), np.asarray(ref), rtol=1e-5, atol=1e-4)
    print("KERNEL_OK")
</pallas_src>

<mosaic_0001>
module attributes {stable_mosaic.version = 11 : i64} {
  func.func @nice_kernel(%arg0: i32, %arg1: memref<128x64xf32, #tpu.memory_space<vmem>>, %arg2: memref<4x64x32xf32, #tpu.memory_space<vmem>>, %arg3: memref<4x32xf32, #tpu.memory_space<vmem>>, %arg4: memref<4x32x32xf32, #tpu.memory_space<vmem>>, %arg5: memref<4x32xf32, #tpu.memory_space<vmem>>, %arg6: memref<4x32x64xf32, #tpu.memory_space<vmem>>, %arg7: memref<4x64xf32, #tpu.memory_space<vmem>>, %arg8: memref<1x64xf32, #tpu.memory_space<vmem>>, %arg9: memref<128x1xf32, #tpu.memory_space<vmem>>) attributes {dimension_semantics = [#tpu.dimension_semantics<parallel>], iteration_bounds = array<i64: 4>, scalar_prefetch = 0 : i64, scratch_operands = 0 : i64, tpu.core_type = #tpu.core_type<tc>, window_params = [{transform_indices = @transform_0, window_bounds = array<i64: 128, 64>}, {pipeline_mode = #tpu.pipeline_mode<synchronous>, transform_indices = @transform_1, window_bounds = array<i64: 4, 64, 32>}, {pipeline_mode = #tpu.pipeline_mode<synchronous>, transform_indices = @transform_2, window_bounds = array<i64: 4, 32>}, {pipeline_mode = #tpu.pipeline_mode<synchronous>, transform_indices = @transform_3, window_bounds = array<i64: 4, 32, 32>}, {pipeline_mode = #tpu.pipeline_mode<synchronous>, transform_indices = @transform_4, window_bounds = array<i64: 4, 32>}, {pipeline_mode = #tpu.pipeline_mode<synchronous>, transform_indices = @transform_5, window_bounds = array<i64: 4, 32, 64>}, {pipeline_mode = #tpu.pipeline_mode<synchronous>, transform_indices = @transform_6, window_bounds = array<i64: 4, 64>}, {pipeline_mode = #tpu.pipeline_mode<synchronous>, transform_indices = @transform_7, window_bounds = array<i64: 1, 64>}, {transform_indices = @transform_8, window_bounds = array<i64: 128, 1>}]} {
    %c0 = arith.constant 0 : index
    %c0_0 = arith.constant 0 : index
    %0 = vector.load %arg1[%c0, %c0_0] : memref<128x64xf32, #tpu.memory_space<vmem>>, vector<128x64xf32>
    %c0_1 = arith.constant 0 : index
    %c0_2 = arith.constant 0 : index
    %c0_3 = arith.constant 0 : index
    %1 = vector.load %arg2[%c0_1, %c0_2, %c0_3] : memref<4x64x32xf32, #tpu.memory_space<vmem>>, vector<1x64x32xf32>
    %2 = vector.shape_cast %1 : vector<1x64x32xf32> to vector<64x32xf32>
    %cst = arith.constant dense<0.000000e+00> : vector<128x32xf32>
    %3 = tpu.matmul %0, %2, %cst {dimension_numbers = #tpu.dot_dimension_numbers<[1], [0], [0], [1], [0, 0, 1, 1], [], []>} : vector<128x64xf32>, vector<64x32xf32>, vector<128x32xf32> -> vector<128x32xf32>
    %c0_4 = arith.constant 0 : index
    %c0_5 = arith.constant 0 : index
    %4 = vector.load %arg3[%c0_4, %c0_5] : memref<4x32xf32, #tpu.memory_space<vmem>>, vector<1x32xf32>
    %5 = vector.shape_cast %4 : vector<1x32xf32> to vector<32xf32>
    %6 = vector.shape_cast %5 : vector<32xf32> to vector<1x32xf32>
    %7 = vector.broadcast %6 : vector<1x32xf32> to vector<128x32xf32>
    %8 = arith.addf %3, %7 : vector<128x32xf32>
    %cst_6 = arith.constant 0.000000e+00 : f32
    %9 = vector.broadcast %cst_6 : f32 to vector<128x32xf32>
    %10 = arith.maximumf %8, %9 : vector<128x32xf32>
    %c0_7 = arith.constant 0 : index
    %c0_8 = arith.constant 0 : index
    %c0_9 = arith.constant 0 : index
    %11 = vector.load %arg4[%c0_7, %c0_8, %c0_9] : memref<4x32x32xf32, #tpu.memory_space<vmem>>, vector<1x32x32xf32>
    %12 = vector.shape_cast %11 : vector<1x32x32xf32> to vector<32x32xf32>
    %cst_10 = arith.constant dense<0.000000e+00> : vector<128x32xf32>
    %13 = tpu.matmul %10, %12, %cst_10 {dimension_numbers = #tpu.dot_dimension_numbers<[1], [0], [0], [1], [0, 0, 1, 1], [], []>} : vector<128x32xf32>, vector<32x32xf32>, vector<128x32xf32> -> vector<128x32xf32>
    %c0_11 = arith.constant 0 : index
    %c0_12 = arith.constant 0 : index
    %14 = vector.load %arg5[%c0_11, %c0_12] : memref<4x32xf32, #tpu.memory_space<vmem>>, vector<1x32xf32>
    %15 = vector.shape_cast %14 : vector<1x32xf32> to vector<32xf32>
    %16 = vector.shape_cast %15 : vector<32xf32> to vector<1x32xf32>
    %17 = vector.broadcast %16 : vector<1x32xf32> to vector<128x32xf32>
    %18 = arith.addf %13, %17 : vector<128x32xf32>
    %cst_13 = arith.constant 0.000000e+00 : f32
    %19 = vector.broadcast %cst_13 : f32 to vector<128x32xf32>
    %20 = arith.maximumf %18, %19 : vector<128x32xf32>
    %c0_14 = arith.constant 0 : index
    %c0_15 = arith.constant 0 : index
    %c0_16 = arith.constant 0 : index
    %21 = vector.load %arg6[%c0_14, %c0_15, %c0_16] : memref<4x32x64xf32, #tpu.memory_space<vmem>>, vector<1x32x64xf32>
    %22 = vector.shape_cast %21 : vector<1x32x64xf32> to vector<32x64xf32>
    %cst_17 = arith.constant dense<0.000000e+00> : vector<128x64xf32>
    %23 = tpu.matmul %20, %22, %cst_17 {dimension_numbers = #tpu.dot_dimension_numbers<[1], [0], [0], [1], [0, 0, 1, 1], [], []>} : vector<128x32xf32>, vector<32x64xf32>, vector<128x64xf32> -> vector<128x64xf32>
    %c0_18 = arith.constant 0 : index
    %c0_19 = arith.constant 0 : index
    %24 = vector.load %arg7[%c0_18, %c0_19] : memref<4x64xf32, #tpu.memory_space<vmem>>, vector<1x64xf32>
    %25 = vector.shape_cast %24 : vector<1x64xf32> to vector<64xf32>
    %26 = vector.shape_cast %25 : vector<64xf32> to vector<1x64xf32>
    %27 = vector.broadcast %26 : vector<1x64xf32> to vector<128x64xf32>
    %28 = arith.addf %23, %27 : vector<128x64xf32>
    %29 = arith.addf %0, %28 : vector<128x64xf32>
    %c1 = arith.constant 1 : index
    %c0_20 = arith.constant 0 : index
    %c0_21 = arith.constant 0 : index
    %30 = vector.load %arg2[%c1, %c0_20, %c0_21] : memref<4x64x32xf32, #tpu.memory_space<vmem>>, vector<1x64x32xf32>
    %31 = vector.shape_cast %30 : vector<1x64x32xf32> to vector<64x32xf32>
    %cst_22 = arith.constant dense<0.000000e+00> : vector<128x32xf32>
    %32 = tpu.matmul %29, %31, %cst_22 {dimension_numbers = #tpu.dot_dimension_numbers<[1], [0], [0], [1], [0, 0, 1, 1], [], []>} : vector<128x64xf32>, vector<64x32xf32>, vector<128x32xf32> -> vector<128x32xf32>
    %c1_23 = arith.constant 1 : index
    %c0_24 = arith.constant 0 : index
    %33 = vector.load %arg3[%c1_23, %c0_24] : memref<4x32xf32, #tpu.memory_space<vmem>>, vector<1x32xf32>
    %34 = vector.shape_cast %33 : vector<1x32xf32> to vector<32xf32>
    %35 = vector.shape_cast %34 : vector<32xf32> to vector<1x32xf32>
    %36 = vector.broadcast %35 : vector<1x32xf32> to vector<128x32xf32>
    %37 = arith.addf %32, %36 : vector<128x32xf32>
    %cst_25 = arith.constant 0.000000e+00 : f32
    %38 = vector.broadcast %cst_25 : f32 to vector<128x32xf32>
    %39 = arith.maximumf %37, %38 : vector<128x32xf32>
    %c1_26 = arith.constant 1 : index
    %c0_27 = arith.constant 0 : index
    %c0_28 = arith.constant 0 : index
    %40 = vector.load %arg4[%c1_26, %c0_27, %c0_28] : memref<4x32x32xf32, #tpu.memory_space<vmem>>, vector<1x32x32xf32>
    %41 = vector.shape_cast %40 : vector<1x32x32xf32> to vector<32x32xf32>
    %cst_29 = arith.constant dense<0.000000e+00> : vector<128x32xf32>
    %42 = tpu.matmul %39, %41, %cst_29 {dimension_numbers = #tpu.dot_dimension_numbers<[1], [0], [0], [1], [0, 0, 1, 1], [], []>} : vector<128x32xf32>, vector<32x32xf32>, vector<128x32xf32> -> vector<128x32xf32>
    %c1_30 = arith.constant 1 : index
    %c0_31 = arith.constant 0 : index
    %43 = vector.load %arg5[%c1_30, %c0_31] : memref<4x32xf32, #tpu.memory_space<vmem>>, vector<1x32xf32>
    %44 = vector.shape_cast %43 : vector<1x32xf32> to vector<32xf32>
    %45 = vector.shape_cast %44 : vector<32xf32> to vector<1x32xf32>
    %46 = vector.broadcast %45 : vector<1x32xf32> to vector<128x32xf32>
    %47 = arith.addf %42, %46 : vector<128x32xf32>
    %cst_32 = arith.constant 0.000000e+00 : f32
    %48 = vector.broadcast %cst_32 : f32 to vector<128x32xf32>
    %49 = arith.maximumf %47, %48 : vector<128x32xf32>
    %c1_33 = arith.constant 1 : index
    %c0_34 = arith.constant 0 : index
    %c0_35 = arith.constant 0 : index
    %50 = vector.load %arg6[%c1_33, %c0_34, %c0_35] : memref<4x32x64xf32, #tpu.memory_space<vmem>>, vector<1x32x64xf32>
    %51 = vector.shape_cast %50 : vector<1x32x64xf32> to vector<32x64xf32>
    %cst_36 = arith.constant dense<0.000000e+00> : vector<128x64xf32>
    %52 = tpu.matmul %49, %51, %cst_36 {dimension_numbers = #tpu.dot_dimension_numbers<[1], [0], [0], [1], [0, 0, 1, 1], [], []>} : vector<128x32xf32>, vector<32x64xf32>, vector<128x64xf32> -> vector<128x64xf32>
    %c1_37 = arith.constant 1 : index
    %c0_38 = arith.constant 0 : index
    %53 = vector.load %arg7[%c1_37, %c0_38] : memref<4x64xf32, #tpu.memory_space<vmem>>, vector<1x64xf32>
    %54 = vector.shape_cast %53 : vector<1x64xf32> to vector<64xf32>
    %55 = vector.shape_cast %54 : vector<64xf32> to vector<1x64xf32>
    %56 = vector.broadcast %55 : vector<1x64xf32> to vector<128x64xf32>
    %57 = arith.addf %52, %56 : vector<128x64xf32>
    %58 = arith.addf %29, %57 : vector<128x64xf32>
    %c2 = arith.constant 2 : index
    %c0_39 = arith.constant 0 : index
    %c0_40 = arith.constant 0 : index
    %59 = vector.load %arg2[%c2, %c0_39, %c0_40] : memref<4x64x32xf32, #tpu.memory_space<vmem>>, vector<1x64x32xf32>
    %60 = vector.shape_cast %59 : vector<1x64x32xf32> to vector<64x32xf32>
    %cst_41 = arith.constant dense<0.000000e+00> : vector<128x32xf32>
    %61 = tpu.matmul %58, %60, %cst_41 {dimension_numbers = #tpu.dot_dimension_numbers<[1], [0], [0], [1], [0, 0, 1, 1], [], []>} : vector<128x64xf32>, vector<64x32xf32>, vector<128x32xf32> -> vector<128x32xf32>
    %c2_42 = arith.constant 2 : index
    %c0_43 = arith.constant 0 : index
    %62 = vector.load %arg3[%c2_42, %c0_43] : memref<4x32xf32, #tpu.memory_space<vmem>>, vector<1x32xf32>
    %63 = vector.shape_cast %62 : vector<1x32xf32> to vector<32xf32>
    %64 = vector.shape_cast %63 : vector<32xf32> to vector<1x32xf32>
    %65 = vector.broadcast %64 : vector<1x32xf32> to vector<128x32xf32>
    %66 = arith.addf %61, %65 : vector<128x32xf32>
    %cst_44 = arith.constant 0.000000e+00 : f32
    %67 = vector.broadcast %cst_44 : f32 to vector<128x32xf32>
    %68 = arith.maximumf %66, %67 : vector<128x32xf32>
    %c2_45 = arith.constant 2 : index
    %c0_46 = arith.constant 0 : index
    %c0_47 = arith.constant 0 : index
    %69 = vector.load %arg4[%c2_45, %c0_46, %c0_47] : memref<4x32x32xf32, #tpu.memory_space<vmem>>, vector<1x32x32xf32>
    %70 = vector.shape_cast %69 : vector<1x32x32xf32> to vector<32x32xf32>
    %cst_48 = arith.constant dense<0.000000e+00> : vector<128x32xf32>
    %71 = tpu.matmul %68, %70, %cst_48 {dimension_numbers = #tpu.dot_dimension_numbers<[1], [0], [0], [1], [0, 0, 1, 1], [], []>} : vector<128x32xf32>, vector<32x32xf32>, vector<128x32xf32> -> vector<128x32xf32>
    %c2_49 = arith.constant 2 : index
    %c0_50 = arith.constant 0 : index
    %72 = vector.load %arg5[%c2_49, %c0_50] : memref<4x32xf32, #tpu.memory_space<vmem>>, vector<1x32xf32>
    %73 = vector.shape_cast %72 : vector<1x32xf32> to vector<32xf32>
    %74 = vector.shape_cast %73 : vector<32xf32> to vector<1x32xf32>
    %75 = vector.broadcast %74 : vector<1x32xf32> to vector<128x32xf32>
    %76 = arith.addf %71, %75 : vector<128x32xf32>
    %cst_51 = arith.constant 0.000000e+00 : f32
    %77 = vector.broadcast %cst_51 : f32 to vector<128x32xf32>
    %78 = arith.maximumf %76, %77 : vector<128x32xf32>
    %c2_52 = arith.constant 2 : index
    %c0_53 = arith.constant 0 : index
    %c0_54 = arith.constant 0 : index
    %79 = vector.load %arg6[%c2_52, %c0_53, %c0_54] : memref<4x32x64xf32, #tpu.memory_space<vmem>>, vector<1x32x64xf32>
    %80 = vector.shape_cast %79 : vector<1x32x64xf32> to vector<32x64xf32>
    %cst_55 = arith.constant dense<0.000000e+00> : vector<128x64xf32>
    %81 = tpu.matmul %78, %80, %cst_55 {dimension_numbers = #tpu.dot_dimension_numbers<[1], [0], [0], [1], [0, 0, 1, 1], [], []>} : vector<128x32xf32>, vector<32x64xf32>, vector<128x64xf32> -> vector<128x64xf32>
    %c2_56 = arith.constant 2 : index
    %c0_57 = arith.constant 0 : index
    %82 = vector.load %arg7[%c2_56, %c0_57] : memref<4x64xf32, #tpu.memory_space<vmem>>, vector<1x64xf32>
    %83 = vector.shape_cast %82 : vector<1x64xf32> to vector<64xf32>
    %84 = vector.shape_cast %83 : vector<64xf32> to vector<1x64xf32>
    %85 = vector.broadcast %84 : vector<1x64xf32> to vector<128x64xf32>
    %86 = arith.addf %81, %85 : vector<128x64xf32>
    %87 = arith.addf %58, %86 : vector<128x64xf32>
    %c3 = arith.constant 3 : index
    %c0_58 = arith.constant 0 : index
    %c0_59 = arith.constant 0 : index
    %88 = vector.load %arg2[%c3, %c0_58, %c0_59] : memref<4x64x32xf32, #tpu.memory_space<vmem>>, vector<1x64x32xf32>
    %89 = vector.shape_cast %88 : vector<1x64x32xf32> to vector<64x32xf32>
    %cst_60 = arith.constant dense<0.000000e+00> : vector<128x32xf32>
    %90 = tpu.matmul %87, %89, %cst_60 {dimension_numbers = #tpu.dot_dimension_numbers<[1], [0], [0], [1], [0, 0, 1, 1], [], []>} : vector<128x64xf32>, vector<64x32xf32>, vector<128x32xf32> -> vector<128x32xf32>
    %c3_61 = arith.constant 3 : index
    %c0_62 = arith.constant 0 : index
    %91 = vector.load %arg3[%c3_61, %c0_62] : memref<4x32xf32, #tpu.memory_space<vmem>>, vector<1x32xf32>
    %92 = vector.shape_cast %91 : vector<1x32xf32> to vector<32xf32>
    %93 = vector.shape_cast %92 : vector<32xf32> to vector<1x32xf32>
    %94 = vector.broadcast %93 : vector<1x32xf32> to vector<128x32xf32>
    %95 = arith.addf %90, %94 : vector<128x32xf32>
    %cst_63 = arith.constant 0.000000e+00 : f32
    %96 = vector.broadcast %cst_63 : f32 to vector<128x32xf32>
    %97 = arith.maximumf %95, %96 : vector<128x32xf32>
    %c3_64 = arith.constant 3 : index
    %c0_65 = arith.constant 0 : index
    %c0_66 = arith.constant 0 : index
    %98 = vector.load %arg4[%c3_64, %c0_65, %c0_66] : memref<4x32x32xf32, #tpu.memory_space<vmem>>, vector<1x32x32xf32>
    %99 = vector.shape_cast %98 : vector<1x32x32xf32> to vector<32x32xf32>
    %cst_67 = arith.constant dense<0.000000e+00> : vector<128x32xf32>
    %100 = tpu.matmul %97, %99, %cst_67 {dimension_numbers = #tpu.dot_dimension_numbers<[1], [0], [0], [1], [0, 0, 1, 1], [], []>} : vector<128x32xf32>, vector<32x32xf32>, vector<128x32xf32> -> vector<128x32xf32>
    %c3_68 = arith.constant 3 : index
    %c0_69 = arith.constant 0 : index
    %101 = vector.load %arg5[%c3_68, %c0_69] : memref<4x32xf32, #tpu.memory_space<vmem>>, vector<1x32xf32>
    %102 = vector.shape_cast %101 : vector<1x32xf32> to vector<32xf32>
    %103 = vector.shape_cast %102 : vector<32xf32> to vector<1x32xf32>
    %104 = vector.broadcast %103 : vector<1x32xf32> to vector<128x32xf32>
    %105 = arith.addf %100, %104 : vector<128x32xf32>
    %cst_70 = arith.constant 0.000000e+00 : f32
    %106 = vector.broadcast %cst_70 : f32 to vector<128x32xf32>
    %107 = arith.maximumf %105, %106 : vector<128x32xf32>
    %c3_71 = arith.constant 3 : index
    %c0_72 = arith.constant 0 : index
    %c0_73 = arith.constant 0 : index
    %108 = vector.load %arg6[%c3_71, %c0_72, %c0_73] : memref<4x32x64xf32, #tpu.memory_space<vmem>>, vector<1x32x64xf32>
    %109 = vector.shape_cast %108 : vector<1x32x64xf32> to vector<32x64xf32>
    %cst_74 = arith.constant dense<0.000000e+00> : vector<128x64xf32>
    %110 = tpu.matmul %107, %109, %cst_74 {dimension_numbers = #tpu.dot_dimension_numbers<[1], [0], [0], [1], [0, 0, 1, 1], [], []>} : vector<128x32xf32>, vector<32x64xf32>, vector<128x64xf32> -> vector<128x64xf32>
    %c3_75 = arith.constant 3 : index
    %c0_76 = arith.constant 0 : index
    %111 = vector.load %arg7[%c3_75, %c0_76] : memref<4x64xf32, #tpu.memory_space<vmem>>, vector<1x64xf32>
    %112 = vector.shape_cast %111 : vector<1x64xf32> to vector<64xf32>
    %113 = vector.shape_cast %112 : vector<64xf32> to vector<1x64xf32>
    %114 = vector.broadcast %113 : vector<1x64xf32> to vector<128x64xf32>
    %115 = arith.addf %110, %114 : vector<128x64xf32>
    %116 = arith.addf %87, %115 : vector<128x64xf32>
    %c0_77 = arith.constant 0 : index
    %c0_78 = arith.constant 0 : index
    %117 = vector.load %arg8[%c0_77, %c0_78] : memref<1x64xf32, #tpu.memory_space<vmem>>, vector<1x64xf32>
    %118 = vector.broadcast %117 : vector<1x64xf32> to vector<128x64xf32>
    %119 = arith.mulf %116, %118 : vector<128x64xf32>
    %120 = arith.mulf %119, %119 : vector<128x64xf32>
    %cst_79 = arith.constant dense<0.000000e+00> : vector<128xf32>
    %121 = vector.multi_reduction <add>, %120, %cst_79 [1] : vector<128x64xf32> to vector<128xf32>
    %122 = vector.shape_cast %121 : vector<128xf32> to vector<128x1xf32>
    %cst_80 = arith.constant -5.000000e-01 : f32
    %123 = vector.broadcast %cst_80 : f32 to vector<128x1xf32>
    %124 = arith.mulf %123, %122 : vector<128x1xf32>
    %c0_81 = arith.constant 0 : index
    %c0_82 = arith.constant 0 : index
    %125 = vector.load %arg9[%c0_81, %c0_82] : memref<128x1xf32, #tpu.memory_space<vmem>>, vector<128x1xf32>
    tpu.vector_store %arg9[%c0_81, %c0_82], %124 {strides = array<i32>} : memref<128x1xf32, #tpu.memory_space<vmem>>, vector<128x1xf32>,
    return
  }
  func.func @transform_0(%arg0: i32) -> (i32, i32) {
    %c0_i32 = arith.constant 0 : i32
    %c0_i32_0 = arith.constant 0 : i32
    return %arg0, %c0_i32 : i32, i32
  }
  func.func @transform_1(%arg0: i32) -> (i32, i32, i32) {
    %c0_i32 = arith.constant 0 : i32
    %c0_i32_0 = arith.constant 0 : i32
    %c0_i32_1 = arith.constant 0 : i32
    %c0_i32_2 = arith.constant 0 : i32
    return %c0_i32, %c0_i32_0, %c0_i32_1 : i32, i32, i32
  }
  func.func @transform_2(%arg0: i32) -> (i32, i32) {
    %c0_i32 = arith.constant 0 : i32
    %c0_i32_0 = arith.constant 0 : i32
    %c0_i32_1 = arith.constant 0 : i32
    return %c0_i32, %c0_i32_0 : i32, i32
  }
  func.func @transform_3(%arg0: i32) -> (i32, i32, i32) {
    %c0_i32 = arith.constant 0 : i32
    %c0_i32_0 = arith.constant 0 : i32
    %c0_i32_1 = arith.constant 0 : i32
    %c0_i32_2 = arith.constant 0 : i32
    return %c0_i32, %c0_i32_0, %c0_i32_1 : i32, i32, i32
  }
  func.func @transform_4(%arg0: i32) -> (i32, i32) {
    %c0_i32 = arith.constant 0 : i32
    %c0_i32_0 = arith.constant 0 : i32
    %c0_i32_1 = arith.constant 0 : i32
    return %c0_i32, %c0_i32_0 : i32, i32
  }
  func.func @transform_5(%arg0: i32) -> (i32, i32, i32) {
    %c0_i32 = arith.constant 0 : i32
    %c0_i32_0 = arith.constant 0 : i32
    %c0_i32_1 = arith.constant 0 : i32
    %c0_i32_2 = arith.constant 0 : i32
    return %c0_i32, %c0_i32_0, %c0_i32_1 : i32, i32, i32
  }
  func.func @transform_6(%arg0: i32) -> (i32, i32) {
    %c0_i32 = arith.constant 0 : i32
    %c0_i32_0 = arith.constant 0 : i32
    %c0_i32_1 = arith.constant 0 : i32
    return %c0_i32, %c0_i32_0 : i32, i32
  }
  func.func @transform_7(%arg0: i32) -> (i32, i32) {
    %c0_i32 = arith.constant 0 : i32
    %c0_i32_0 = arith.constant 0 : i32
    %c0_i32_1 = arith.constant 0 : i32
    return %c0_i32, %c0_i32_0 : i32, i32
  }
  func.func @transform_8(%arg0: i32) -> (i32, i32) {
    %c0_i32 = arith.constant 0 : i32
    %c0_i32_0 = arith.constant 0 : i32
    return %arg0, %c0_i32 : i32, i32
  }
}

</mosaic_0001>

<llo_original>
// kernel: nice_forward_pallas.1
$region0: #{nice_forward_pallas.1}
  #allocation0 [shape = 'u32[]', space=smem, size = 0x4, offset = 0x4, fixed_abs, tag = 'smem constant byte address 0x4 - core index']
  #allocation1 [shape = 'u32[144,128]{1,0:T(1,128)}', space=vmem, size = 0x12000, scoped, tag = 'internal scratch']
  %s0 = inlined_call_operand.vmem [shape: f32[512,64], index: 0, kind: input, shape index: {}]
  %s1 = inlined_call_operand.vmem [shape: f32[4,64,32], index: 1, kind: input, shape index: {}]
  %s2 = inlined_call_operand.vmem [shape: f32[4,32], index: 2, kind: input, shape index: {}]
  %s3 = inlined_call_operand.vmem [shape: f32[4,32,32], index: 3, kind: input, shape index: {}]
  %s4 = inlined_call_operand.vmem [shape: f32[4,32], index: 4, kind: input, shape index: {}]
  %s5 = inlined_call_operand.vmem [shape: f32[4,32,64], index: 5, kind: input, shape index: {}]
  %s6 = inlined_call_operand.vmem [shape: f32[4,64], index: 6, kind: input, shape index: {}]
  %s7 = inlined_call_operand.vmem [shape: f32[1,64], index: 7, kind: input, shape index: {}]
  %s8 = inlined_call_operand.vmem [shape: f32[512,1], index: 8, kind: output, shape index: {}]
  %s9 = sld [smem:[#allocation0]]
  $region65: #{nice_forward_pallas.1} parent=0
    _
  %s11 = ssub.s32 1, %s9
  %s12 = scalar_select 0, %s11, %s9
  loop: start=0, step=1, limit=6
  $region2: #{nice_forward_pallas.1} parent=0 // loop_pre_header
    _
  $region3: #{nice_forward_pallas.1} parent=0 // loop_header
    %s14 = sphi 0, %s18
    %p15 = scmp.ge.s32.totalorder %s14, 6
    %s24 = sphi 0, %s26
    %s27 = sphi 0, %s24
    %s28 = sphi 0, %s27
    %s44 = sphi 0, %s28
    %s48 = sphi 0, %s48
    %s50 = sphi 0, %s48
    %s51 = sphi 0, %s50
    %s65 = sphi 0, %s51
    %s69 = sphi 0, %s69
    %s71 = sphi 0, %s69
    %s72 = sphi 0, %s71
    %s86 = sphi 0, %s72
    %s90 = sphi 0, %s90
    %s92 = sphi 0, %s90
    %s93 = sphi 0, %s92
    %s107 = sphi 0, %s93
    %s111 = sphi 0, %s111
    %s113 = sphi 0, %s111
    %s114 = sphi 0, %s113
    %s128 = sphi 0, %s114
    %s132 = sphi 0, %s132
    %s134 = sphi 0, %s132
    %s135 = sphi 0, %s134
    %s149 = sphi 0, %s135
    %s153 = sphi 0, %s153
    %s155 = sphi 0, %s153
    %s156 = sphi 0, %s155
    %s170 = sphi 0, %s156
    %s174 = sphi 0, %s174
    %s176 = sphi 0, %s174
    %s177 = sphi 0, %s176
    %s191 = sphi 0, %s177
    %s197 = sphi 0, %s199
    %s200 = sphi 0, %s197
    %s201 = sphi 0, %s200
    %s217 = sphi 0, %s201
  $region4: #{nice_forward_pallas.1} parent=0 // loop_header_branch
    %17 = sbr.rel (%p15) target = $region8
  $region5: #{nice_forward_pallas.1} parent=0 // loop_body
    %s19 = ssub.s32 %s14, 1
    %s20 = ssub.s32 %s14, 2
    %s21 = sadd.s32 %s14, 1
    %s22 = ssub.s32 %s14, %s21
    %p23 = scmp.eq.s32.totalorder %s22, 0
    %s25 = sadd.s32 %s24, 1
    %s26 = scalar_select %p23, %s24, %s25
    %p29 = pneg %p23
    %p30 = scmp.eq.s32.totalorder %s14, 3
    %p31 = por %p29, %p30
    %p32 = scmp.ne.s32.totalorder %s24, %s27
    %p33 = scmp.eq.s32.totalorder %s14, 0
    %p34 = por %p32, %p33
    %p35 = scmp.ne.s32.totalorder %s24, %s27
    %p36 = scmp.eq.s32.totalorder %s19, 3
    %p37 = por %p35, %p36
    %p38 = scmp.ne.s32.totalorder %s27, %s28
    %p39 = scmp.eq.s32.totalorder %s19, 0
    %p40 = por %p38, %p39
    %p41 = scmp.ne.s32.totalorder %s27, %s28
    %p42 = scmp.eq.s32.totalorder %s20, 3
    %p43 = por %p41, %p42
    %p45 = scmp.ne.s32.totalorder %s28, %s44
    %p46 = scmp.eq.s32.totalorder %s20, 0
    %p47 = por %p45, %p46
    %s49 = sadd.s32 %s48, 1
    %p52 = scmp.eq.s32.totalorder %s14, 3
    %p53 = scmp.ne.s32.totalorder %s48, %s50
    %p54 = scmp.eq.s32.totalorder %s14, 0
    %p55 = por %p53, %p54
    %p56 = scmp.ne.s32.totalorder %s48, %s50
    %p57 = scmp.eq.s32.totalorder %s19, 3
    %p58 = por %p56, %p57
    %p59 = scmp.ne.s32.totalorder %s50, %s51
    %p60 = scmp.eq.s32.totalorder %s19, 0
    %p61 = por %p59, %p60
    %p62 = scmp.ne.s32.totalorder %s50, %s51
    %p63 = scmp.eq.s32.totalorder %s20, 3
    %p64 = por %p62, %p63
    %p66 = scmp.ne.s32.totalorder %s51, %s65
    %p67 = scmp.eq.s32.totalorder %s20, 0
    %p68 = por %p66, %p67
    %s70 = sadd.s32 %s69, 1
    %p73 = scmp.eq.s32.totalorder %s14, 3
    %p74 = scmp.ne.s32.totalorder %s69, %s71
    %p75 = scmp.eq.s32.totalorder %s14, 0
    %p76 = por %p74, %p75
    %p77 = scmp.ne.s32.totalorder %s69, %s71
    %p78 = scmp.eq.s32.totalorder %s19, 3
    %p79 = por %p77, %p78
    %p80 = scmp.ne.s32.totalorder %s71, %s72
    %p81 = scmp.eq.s32.totalorder %s19, 0
    %p82 = por %p80, %p81
    %p83 = scmp.ne.s32.totalorder %s71, %s72
    %p84 = scmp.eq.s32.totalorder %s20, 3
    %p85 = por %p83, %p84
    %p87 = scmp.ne.s32.totalorder %s72, %s86
    %p88 = scmp.eq.s32.totalorder %s20, 0
    %p89 = por %p87, %p88
    %s91 = sadd.s32 %s90, 1
    %p94 = scmp.eq.s32.totalorder %s14, 3
    %p95 = scmp.ne.s32.totalorder %s90, %s92
    %p96 = scmp.eq.s32.totalorder %s14, 0
    %p97 = por %p95, %p96
    %p98 = scmp.ne.s32.totalorder %s90, %s92
    %p99 = scmp.eq.s32.totalorder %s19, 3
    %p100 = por %p98, %p99
    %p101 = scmp.ne.s32.totalorder %s92, %s93
    %p102 = scmp.eq.s32.totalorder %s19, 0
    %p103 = por %p101, %p102
    %p104 = scmp.ne.s32.totalorder %s92, %s93
    %p105 = scmp.eq.s32.totalorder %s20, 3
    %p106 = por %p104, %p105
    %p108 = scmp.ne.s32.totalorder %s93, %s107
    %p109 = scmp.eq.s32.totalorder %s20, 0
    %p110 = por %p108, %p109
    %s112 = sadd.s32 %s111, 1
    %p115 = scmp.eq.s32.totalorder %s14, 3
    %p116 = scmp.ne.s32.totalorder %s111, %s113
    %p117 = scmp.eq.s32.totalorder %s14, 0
    %p118 = por %p116, %p117
    %p119 = scmp.ne.s32.totalorder %s111, %s113
    %p120 = scmp.eq.s32.totalorder %s19, 3
    %p121 = por %p119, %p120
    %p122 = scmp.ne.s32.totalorder %s113, %s114
    %p123 = scmp.eq.s32.totalorder %s19, 0
    %p124 = por %p122, %p123
    %p125 = scmp.ne.s32.totalorder %s113, %s114
    %p126 = scmp.eq.s32.totalorder %s20, 3
    %p127 = por %p125, %p126
    %p129 = scmp.ne.s32.totalorder %s114, %s128
    %p130 = scmp.eq.s32.totalorder %s20, 0
    %p131 = por %p129, %p130
    %s133 = sadd.s32 %s132, 1
    %p136 = scmp.eq.s32.totalorder %s14, 3
    %p137 = scmp.ne.s32.totalorder %s132, %s134
    %p138 = scmp.eq.s32.totalorder %s14, 0
    %p139 = por %p137, %p138
    %p140 = scmp.ne.s32.totalorder %s132, %s134
    %p141 = scmp.eq.s32.totalorder %s19, 3
    %p142 = por %p140, %p141
    %p143 = scmp.ne.s32.totalorder %s134, %s135
    %p144 = scmp.eq.s32.totalorder %s19, 0
    %p145 = por %p143, %p144
    %p146 = scmp.ne.s32.totalorder %s134, %s135
    %p147 = scmp.eq.s32.totalorder %s20, 3
    %p148 = por %p146, %p147
    %p150 = scmp.ne.s32.totalorder %s135, %s149
    %p151 = scmp.eq.s32.totalorder %s20, 0
    %p152 = por %p150, %p151
    %s154 = sadd.s32 %s153, 1
    %p157 = scmp.eq.s32.totalorder %s14, 3
    %p158 = scmp.ne.s32.totalorder %s153, %s155
    %p159 = scmp.eq.s32.totalorder %s14, 0
    %p160 = por %p158, %p159
    %p161 = scmp.ne.s32.totalorder %s153, %s155
    %p162 = scmp.eq.s32.totalorder %s19, 3
    %p163 = por %p161, %p162
    %p164 = scmp.ne.s32.totalorder %s155, %s156
    %p165 = scmp.eq.s32.totalorder %s19, 0
    %p166 = por %p164, %p165
    %p167 = scmp.ne.s32.totalorder %s155, %s156
    %p168 = scmp.eq.s32.totalorder %s20, 3
    %p169 = por %p167, %p168
    %p171 = scmp.ne.s32.totalorder %s156, %s170
    %p172 = scmp.eq.s32.totalorder %s20, 0
    %p173 = por %p171, %p172
    %s175 = sadd.s32 %s174, 1
    %p178 = scmp.eq.s32.totalorder %s14, 3
    %p179 = scmp.ne.s32.totalorder %s174, %s176
    %p180 = scmp.eq.s32.totalorder %s14, 0
    %p181 = por %p179, %p180
    %p182 = scmp.ne.s32.totalorder %s174, %s176
    %p183 = scmp.eq.s32.totalorder %s19, 3
    %p184 = por %p182, %p183
    %p185 = scmp.ne.s32.totalorder %s176, %s177
    %p186 = scmp.eq.s32.totalorder %s19, 0
    %p187 = por %p185, %p186
    %p188 = scmp.ne.s32.totalorder %s176, %s177
    %p189 = scmp.eq.s32.totalorder %s20, 3
    %p190 = por %p188, %p189
    %p192 = scmp.ne.s32.totalorder %s177, %s191
    %p193 = scmp.eq.s32.totalorder %s20, 0
    %p194 = por %p192, %p193
    %s195 = ssub.s32 %s14, %s21
    %p196 = scmp.eq.s32.totalorder %s195, 0
    %s198 = sadd.s32 %s197, 1
    %s199 = scalar_select %p196, %s197, %s198
    %p202 = pneg %p196
    %p203 = scmp.eq.s32.totalorder %s14, 3
    %p204 = por %p202, %p203
    %p205 = scmp.ne.s32.totalorder %s197, %s200
    %p206 = scmp.eq.s32.totalorder %s14, 0
    %p207 = por %p205, %p206
    %p208 = scmp.ne.s32.totalorder %s197, %s200
    %p209 = scmp.eq.s32.totalorder %s19, 3
    %p210 = por %p208, %p209
    %p211 = scmp.ne.s32.totalorder %s200, %s201
    %p212 = scmp.eq.s32.totalorder %s19, 0
    %p213 = por %p211, %p212
    %p214 = scmp.ne.s32.totalorder %s200, %s201
    %p215 = scmp.eq.s32.totalorder %s20, 3
    %p216 = por %p214, %p215
    %p218 = scmp.ne.s32.totalorder %s201, %s217
    %p219 = scmp.eq.s32.totalorder %s20, 0
    %p220 = por %p218, %p219
    %p221 = scmp.le.s32.totalorder 1, %s14
    %p222 = scmp.lt.s32.totalorder %s14, 5
    %p223 = pnand %p221, %p222
    %p224 = pneg %p223
    // Predicated region
    $region9: #{nice_forward_pallas.1} parent=5 // pred_check
      _
    $region10: #{nice_forward_pallas.1} parent=5 // pred_check_branch
      %226 = sbr.rel (%p223) target = $region12
    $region11: #{nice_forward_pallas.1} parent=5 // pred_region
      %s227 = ssub.s32 %s14, 1
      // Predicated region
      $region13: #{nice_forward_pallas.1} parent=11 // pred_check
        %p228 = pneg %p61
      $region14: #{nice_forward_pallas.1} parent=11 // pred_check_branch
        %230 = sbr.rel (%p228) target = $region16
      $region15: #{nice_forward_pallas.1} parent=11 // pred_region
        _
      $region16: #{nice_forward_pallas.1} parent=11 // pred_fallthru
        _
      // Predicated region
      $region17: #{nice_forward_pallas.1} parent=11 // pred_check
        %p231 = pneg %p82
      $region18: #{nice_forward_pallas.1} parent=11 // pred_check_branch
        %233 = sbr.rel (%p231) target = $region20
      $region19: #{nice_forward_pallas.1} parent=11 // pred_region
        _
      $region20: #{nice_forward_pallas.1} parent=11 // pred_fallthru
        _
      // Predicated region
      $region21: #{nice_forward_pallas.1} parent=11 // pred_check
        %p234 = pneg %p103
      $region22: #{nice_forward_pallas.1} parent=11 // pred_check_branch
        %236 = sbr.rel (%p234) target = $region24
      $region23: #{nice_forward_pallas.1} parent=11 // pred_region
        _
      $region24: #{nice_forward_pallas.1} parent=11 // pred_fallthru
        _
      // Predicated region
      $region25: #{nice_forward_pallas.1} parent=11 // pred_check
        %p237 = pneg %p124
      $region26: #{nice_forward_pallas.1} parent=11 // pred_check_branch
        %239 = sbr.rel (%p237) target = $region28
      $region27: #{nice_forward_pallas.1} parent=11 // pred_region
        _
      $region28: #{nice_forward_pallas.1} parent=11 // pred_fallthru
        _
      // Predicated region
      $region29: #{nice_forward_pallas.1} parent=11 // pred_check
        %p240 = pneg %p145
      $region30: #{nice_forward_pallas.1} parent=11 // pred_check_branch
        %242 = sbr.rel (%p240) target = $region32
      $region31: #{nice_forward_pallas.1} parent=11 // pred_region
        _
      $region32: #{nice_forward_pallas.1} parent=11 // pred_fallthru
        _
      // Predicated region
      $region33: #{nice_forward_pallas.1} parent=11 // pred_check
        %p243 = pneg %p166
      $region34: #{nice_forward_pallas.1} parent=11 // pred_check_branch
        %245 = sbr.rel (%p243) target = $region36
      $region35: #{nice_forward_pallas.1} parent=11 // pred_region
        _
      $region36: #{nice_forward_pallas.1} parent=11 // pred_fallthru
        _
      // Predicated region
      $region37: #{nice_forward_pallas.1} parent=11 // pred_check
        %p246 = pneg %p187
      $region38: #{nice_forward_pallas.1} parent=11 // pred_check_branch
        %248 = sbr.rel (%p246) target = $region40
      $region39: #{nice_forward_pallas.1} parent=11 // pred_region
        _
      $region40: #{nice_forward_pallas.1} parent=11 // pred_fallthru
        _
    $region12: #{nice_forward_pallas.1} parent=5 // pred_fallthru
      _
    %p249 = scmp.lt.s32.totalorder %s14, 4
    // Predicated region
    $region41: #{nice_forward_pallas.1} parent=5 // pred_check
      %p250 = pneg %p249
    $region42: #{nice_forward_pallas.1} parent=5 // pred_check_branch
      %252 = sbr.rel (%p250) target = $region44
    $region43: #{nice_forward_pallas.1} parent=5 // pred_region
      // Predicated region
      $region45: #{nice_forward_pallas.1} parent=43 // pred_check
        %p253 = pneg %p34
      $region46: #{nice_forward_pallas.1} parent=43 // pred_check_branch
        %255 = sbr.rel (%p253) target = $region48
      $region47: #{nice_forward_pallas.1} parent=43 // pred_region
        %s256 = smul.u32 16, %s14
        %p257 = scmp.lt.s32.totalorder %s256, 63
        %s258 = scalar_select %p257, %s256, 63
        %s259 = smul.addr %s258, 8
        %s260 = scalar_lea.vmem %s0, %s259
        %s261 = smul.u32 16, %s14
      $region48: #{nice_forward_pallas.1} parent=43 // pred_fallthru
        _
    $region44: #{nice_forward_pallas.1} parent=5 // pred_fallthru
      _
    %p262 = scmp.le.s32.totalorder 1, %s14
    %p263 = scmp.lt.s32.totalorder %s14, 5
    %p264 = pnand %p262, %p263
    %p265 = pneg %p264
    // Predicated region
    $region49: #{nice_forward_pallas.1} parent=5 // pred_check
      _
    $region50: #{nice_forward_pallas.1} parent=5 // pred_check_branch
      %267 = sbr.rel (%p264) target = $region52
    $region51: #{nice_forward_pallas.1} parent=5 // pred_region
      %s268 = ssub.s32 %s14, 1
      %s269 = smul.u32 16, %s19
      %p270 = scmp.lt.s32.totalorder %s269, 63
      %s271 = scalar_select %p270, %s269, 63
      %s272 = smul.addr %s271, 8
      %s273 = scalar_lea.vmem %s0, %s272
      %p274 = pneg %p40
      %p275 = pneg %p37
      %p276 = pneg %p61
      %p277 = pneg %p58
      %p278 = pneg %p82
      %p279 = pneg %p79
      %p280 = pneg %p103
      %p281 = pneg %p100
      %p282 = pneg %p124
      %p283 = pneg %p121
      %p284 = pneg %p145
      %p285 = pneg %p142
      %p286 = pneg %p166
      %p287 = pneg %p163
      %p288 = pneg %p187
      %p289 = pneg %p184
      %p290 = pneg %p213
      %p291 = pneg %p210
      %s292 = smul.u32 16, %s19
      %p293 = scmp.lt.s32.totalorder %s292, 63
      %s294 = scalar_select %p293, %s292, 63
      %s295 = smul.addr %s294, 8
      %s296 = scalar_lea.vmem %s8, %s295
      %s297 = smul.u32 16, %s19
      %p298 = scmp.lt.s32.totalorder %s297, 63
      %s299 = scalar_select %p298, %s297, 63
      %s300 = smul.addr %s299, 8
      %s301 = scalar_lea.vmem %s0, %s300
      %s302 = smul.u32 16, %s19
      %s303 = smul.u32 16, %s19
      %p304 = scmp.lt.s32.totalorder %s303, 63
      %s305 = scalar_select %p304, %s303, 63
      %s306 = smul.addr %s305, 8
      %s307 = scalar_lea.vmem %s8, %s306
      %s308 = smul.u32 16, %s19
      %v309 = vld [vmem:[%s301] sm:$0xff]
      %v310 = vld [vmem:[%s301 + $0x8] sm:$0xff]
      %v311 = vld [vmem:[%s301 + $0x10] sm:$0xff]
      %v312 = vld [vmem:[%s301 + $0x18] sm:$0xff]
      %v313 = vld [vmem:[%s301 + $0x20] sm:$0xff]
      %v314 = vld [vmem:[%s301 + $0x28] sm:$0xff]
      %v315 = vld [vmem:[%s301 + $0x30] sm:$0xff]
      %v316 = vld [vmem:[%s301 + $0x38] sm:$0xff]
      %v317 = vld [vmem:[%s301 + $0x40] sm:$0xff]
      %v318 = vld [vmem:[%s301 + $0x48] sm:$0xff]
      %v319 = vld [vmem:[%s301 + $0x50] sm:$0xff]
      %v320 = vld [vmem:[%s301 + $0x58] sm:$0xff]
      %v321 = vld [vmem:[%s301 + $0x60] sm:$0xff]
      %v322 = vld [vmem:[%s301 + $0x68] sm:$0xff]
      %v323 = vld [vmem:[%s301 + $0x70] sm:$0xff]
      %v324 = vld [vmem:[%s301 + $0x78] sm:$0xff]
      %v325 = vld [vmem:[%s1] sm:$0xff]
      %v326 = vld [vmem:[%s1 + $0x8] sm:$0xff]
      %v327 = vld [vmem:[%s1 + $0x10] sm:$0xff]
      %v328 = vld [vmem:[%s1 + $0x18] sm:$0xff]
      %v329 = vld [vmem:[%s1 + $0x20] sm:$0xff]
      %v330 = vld [vmem:[%s1 + $0x28] sm:$0xff]
      %v331 = vld [vmem:[%s1 + $0x30] sm:$0xff]
      %v332 = vld [vmem:[%s1 + $0x38] sm:$0xff]
      %v333 = vld [vmem:[%s2] sm:$0x1]
      %v334 = vlaneseq
      %v335 = vshrl.u32 %v334, 7
      %v336 = vsub.s32 0, %v335
      %v337 = vrot.slane %v333, %v336
      %vm338 = vcmask 523264
      %v340 = vsel %vm338, %v309, 0
      %v343 = vsel %vm338, %v310, 0
      %v346 = vsel %vm338, %v311, 0
      %v349 = vsel %vm338, %v312, 0
      %v352 = vsel %vm338, %v313, 0
      %v355 = vsel %vm338, %v314, 0
      %v358 = vsel %vm338, %v315, 0
      %v361 = vsel %vm338, %v316, 0
      %v364 = vsel %vm338, %v317, 0
      %v367 = vsel %vm338, %v318, 0
      %v370 = vsel %vm338, %v319, 0
      %v373 = vsel %vm338, %v320, 0
      %v376 = vsel %vm338, %v321, 0
      %v379 = vsel %vm338, %v322, 0
      %v382 = vsel %vm338, %v323, 0
      %v385 = vsel %vm338, %v324, 0
      %387 = vmatprep.subr.mxu0 0.0
      %388 = vmatpush1.msra.mxu0 0.0
      %389 = vmatprep.subr.mxu0 0.0
      %390 = vmatpush1.msra.mxu0 0.0
      %391 = vmatprep.subr.mxu0 0.0
      %392 = vmatpush1.msra.mxu0 0.0
      %393 = vmatprep.subr.mxu0 0.0
      %394 = vmatpush1.msra.mxu0 0.0
      %395 = vmatprep.subr.mxu0 0.0
      %396 = vmatpush1.msra.mxu0 0.0
      %397 = vmatprep.subr.mxu0 0.0
      %398 = vmatpush1.msra.mxu0 0.0
      %399 = vmatprep.subr.mxu0 0.0
      %400 = vmatpush1.msra.mxu0 0.0
      %401 = vmatprep.subr.mxu0 0.0
      %402 = vmatpush1.msra.mxu0 0.0
      %403 = vmatprep.subr.mxu0 0.0
      %404 = vmatpush1.msra.mxu0 %v332
      %405 = vmatprep.subr.mxu0 0.0
      %406 = vmatpush1.msra.mxu0 %v331
      %407 = vmatprep.subr.mxu0 0.0
      %408 = vmatpush1.msra.mxu0 %v330
      %409 = vmatprep.subr.mxu0 0.0
      %410 = vmatpush1.msra.mxu0 %v329
      %411 = vmatprep.subr.mxu0 0.0
      %412 = vmatpush1.msra.mxu0 %v328
      %413 = vmatprep.subr.mxu0 0.0
      %414 = vmatpush1.msra.mxu0 %v327
      %415 = vmatprep.subr.mxu0 0.0
      %416 = vmatpush1.msra.mxu0 %v326
      %417 = vmatprep.subr.mxu0 0.0
      %418 = vmatpush1.msra.mxu0 %v325
      %419 = vmatprep.subr.mxu0 0.0
      %420 = vmatpush2.msra.mxu0 0.0
      %421 = vmatprep.subr.mxu0 0.0
      %422 = vmatpush2.msra.mxu0 0.0
      %423 = vmatprep.subr.mxu0 0.0
      %424 = vmatpush2.msra.mxu0 0.0
      %425 = vmatprep.subr.mxu0 0.0
      %426 = vmatpush2.msra.mxu0 0.0
      %427 = vmatprep.subr.mxu0 0.0
      %428 = vmatpush2.msra.mxu0 0.0
      %429 = vmatprep.subr.mxu0 0.0
      %430 = vmatpush2.msra.mxu0 0.0
      %431 = vmatprep.subr.mxu0 0.0
      %432 = vmatpush2.msra.mxu0 0.0
      %433 = vmatprep.subr.mxu0 0.0
      %434 = vmatpush2.msra.mxu0 0.0
      %435 = vmatprep.subr.mxu0 0.0
      %436 = vmatpush2.msra.mxu0 0.0
      %437 = vmatprep.subr.mxu0 0.0
      %438 = vmatpush2.msra.mxu0 0.0
      %439 = vmatprep.subr.mxu0 0.0
      %440 = vmatpush2.msra.mxu0 0.0
      %441 = vmatprep.subr.mxu0 0.0
      %442 = vmatpush2.msra.mxu0 0.0
      %443 = vmatprep.subr.mxu0 0.0
      %444 = vmatpush2.msra.mxu0 0.0
      %445 = vmatprep.subr.mxu0 0.0
      %446 = vmatpush2.msra.mxu0 0.0
      %447 = vmatprep.subr.mxu0 0.0
      %448 = vmatpush2.msra.mxu0 0.0
      %449 = vmatprep.subr.mxu0 0.0
      %450 = vmatpush2.msra.mxu0 0.0
      %451 = vmatprep.mubr.f32.mxu0 0.0
      %452 = vmatmul.mubr.f32.gmra.mxu0 %v340
      %v453 = vpop.f32.mrf.mxu0
      %v454 = vadd.f32 %v337, %v453
      %v455 = vpop.f32.mrf.mxu0
      %456 = vmatprep.mubr.f32.mxu0 0.0
      %457 = vmatmul.mubr.f32.gmra.mxu0 %v343
      %v458 = vpop.f32.mrf.mxu0
      %v459 = vadd.f32 %v337, %v458
      %v460 = vpop.f32.mrf.mxu0
      %461 = vmatprep.mubr.f32.mxu0 0.0
      %462 = vmatmul.mubr.f32.gmra.mxu0 %v346
      %v463 = vpop.f32.mrf.mxu0
      %v464 = vadd.f32 %v337, %v463
      %v465 = vpop.f32.mrf.mxu0
      %466 = vmatprep.mubr.f32.mxu0 0.0
      %467 = vmatmul.mubr.f32.gmra.mxu0 %v349
      %v468 = vpop.f32.mrf.mxu0
      %v469 = vadd.f32 %v337, %v468
      %v470 = vpop.f32.mrf.mxu0
      %471 = vmatprep.mubr.f32.mxu0 0.0
      %472 = vmatmul.mubr.f32.gmra.mxu0 %v352
      %v473 = vpop.f32.mrf.mxu0
      %v474 = vadd.f32 %v337, %v473
      %v475 = vpop.f32.mrf.mxu0
      %476 = vmatprep.mubr.f32.mxu0 0.0
      %477 = vmatmul.mubr.f32.gmra.mxu0 %v355
      %v478 = vpop.f32.mrf.mxu0
      %v479 = vadd.f32 %v337, %v478
      %v480 = vpop.f32.mrf.mxu0
      %481 = vmatprep.mubr.f32.mxu0 0.0
      %482 = vmatmul.mubr.f32.gmra.mxu0 %v358
      %v483 = vpop.f32.mrf.mxu0
      %v484 = vadd.f32 %v337, %v483
      %v485 = vpop.f32.mrf.mxu0
      %486 = vmatprep.mubr.f32.mxu0 0.0
      %487 = vmatmul.mubr.f32.gmra.mxu0 %v361
      %v488 = vpop.f32.mrf.mxu0
      %v489 = vadd.f32 %v337, %v488
      %v490 = vpop.f32.mrf.mxu0
      %491 = vmatprep.mubr.f32.mxu0 0.0
      %492 = vmatmul.mubr.f32.gmra.mxu0 %v364
      %v493 = vpop.f32.mrf.mxu0
      %v494 = vadd.f32 %v337, %v493
      %v495 = vpop.f32.mrf.mxu0
      %496 = vmatprep.mubr.f32.mxu0 0.0
      %497 = vmatmul.mubr.f32.gmra.mxu0 %v367
      %v498 = vpop.f32.mrf.mxu0
      %v499 = vadd.f32 %v337, %v498
      %v500 = vpop.f32.mrf.mxu0
      %501 = vmatprep.mubr.f32.mxu0 0.0
      %502 = vmatmul.mubr.f32.gmra.mxu0 %v370
      %v503 = vpop.f32.mrf.mxu0
      %v504 = vadd.f32 %v337, %v503
      %v505 = vpop.f32.mrf.mxu0
      %506 = vmatprep.mubr.f32.mxu0 0.0
      %507 = vmatmul.mubr.f32.gmra.mxu0 %v373
      %v508 = vpop.f32.mrf.mxu0
      %v509 = vadd.f32 %v337, %v508
      %v510 = vpop.f32.mrf.mxu0
      %511 = vmatprep.mubr.f32.mxu0 0.0
      %512 = vmatmul.mubr.f32.gmra.mxu0 %v376
      %v513 = vpop.f32.mrf.mxu0
      %v514 = vadd.f32 %v337, %v513
      %v515 = vpop.f32.mrf.mxu0
      %516 = vmatprep.mubr.f32.mxu0 0.0
      %517 = vmatmul.mubr.f32.gmra.mxu0 %v379
      %v518 = vpop.f32.mrf.mxu0
      %v519 = vadd.f32 %v337, %v518
      %v520 = vpop.f32.mrf.mxu0
      %521 = vmatprep.mubr.f32.mxu0 0.0
      %522 = vmatmul.mubr.f32.gmra.mxu0 %v382
      %v523 = vpop.f32.mrf.mxu0
      %v524 = vadd.f32 %v337, %v523
      %v525 = vpop.f32.mrf.mxu0
      %526 = vmatprep.mubr.f32.mxu0 0.0
      %527 = vmatmul.mubr.f32.gmra.mxu0 %v385
      %v528 = vpop.f32.mrf.mxu0
      %v529 = vadd.f32 %v337, %v528
      %v530 = vpop.f32.mrf.mxu0
      %531 = vdwg.mxu0
      %v532 = vmax.f32 %v454, 0.0
      %v533 = vmax.f32 %v459, 0.0
      %v534 = vmax.f32 %v464, 0.0
      %v535 = vmax.f32 %v469, 0.0
      %v536 = vmax.f32 %v474, 0.0
      %v537 = vmax.f32 %v479, 0.0
      %v538 = vmax.f32 %v484, 0.0
      %v539 = vmax.f32 %v489, 0.0
      %v540 = vmax.f32 %v494, 0.0
      %v541 = vmax.f32 %v499, 0.0
      %v542 = vmax.f32 %v504, 0.0
      %v543 = vmax.f32 %v509, 0.0
      %v544 = vmax.f32 %v514, 0.0
      %v545 = vmax.f32 %v519, 0.0
      %v546 = vmax.f32 %v524, 0.0
      %v547 = vmax.f32 %v529, 0.0
      %v548 = vld [vmem:[%s3] sm:$0xff]
      %v549 = vld [vmem:[%s3 + $0x8] sm:$0xff]
      %v550 = vld [vmem:[%s3 + $0x10] sm:$0xff]
      %v551 = vld [vmem:[%s3 + $0x18] sm:$0xff]
      %v552 = vld [vmem:[%s4] sm:$0x1]
      %v553 = vlaneseq
      %v554 = vshrl.u32 %v553, 7
      %v555 = vsub.s32 0, %v554
      %v556 = vrot.slane %v552, %v555
      %vm557 = vcmask 261120
      %v559 = vsel %vm557, %v532, 0
      %v562 = vsel %vm557, %v533, 0
      %v565 = vsel %vm557, %v534, 0
      %v568 = vsel %vm557, %v535, 0
      %v571 = vsel %vm557, %v536, 0
      %v574 = vsel %vm557, %v537, 0
      %v577 = vsel %vm557, %v538, 0
      %v580 = vsel %vm557, %v539, 0
      %v583 = vsel %vm557, %v540, 0
      %v586 = vsel %vm557, %v541, 0
      %v589 = vsel %vm557, %v542, 0
      %v592 = vsel %vm557, %v543, 0
      %v595 = vsel %vm557, %v544, 0
      %v598 = vsel %vm557, %v545, 0
      %v601 = vsel %vm557, %v546, 0
      %v604 = vsel %vm557, %v547, 0
      %606 = vmatprep.subr.mxu0 0.0
      %607 = vmatpush1.msra.mxu0 0.0
      %608 = vmatprep.subr.mxu0 0.0
      %609 = vmatpush1.msra.mxu0 0.0
      %610 = vmatprep.subr.mxu0 0.0
      %611 = vmatpush1.msra.mxu0 0.0
      %612 = vmatprep.subr.mxu0 0.0
      %613 = vmatpush1.msra.mxu0 0.0
      %614 = vmatprep.subr.mxu0 0.0
      %615 = vmatpush1.msra.mxu0 0.0
      %616 = vmatprep.subr.mxu0 0.0
      %617 = vmatpush1.msra.mxu0 0.0
      %618 = vmatprep.subr.mxu0 0.0
      %619 = vmatpush1.msra.mxu0 0.0
      %620 = vmatprep.subr.mxu0 0.0
      %621 = vmatpush1.msra.mxu0 0.0
      %622 = vmatprep.subr.mxu0 0.0
      %623 = vmatpush1.msra.mxu0 0.0
      %624 = vmatprep.subr.mxu0 0.0
      %625 = vmatpush1.msra.mxu0 0.0
      %626 = vmatprep.subr.mxu0 0.0
      %627 = vmatpush1.msra.mxu0 0.0
      %628 = vmatprep.subr.mxu0 0.0
      %629 = vmatpush1.msra.mxu0 0.0
      %630 = vmatprep.subr.mxu0 0.0
      %631 = vmatpush1.msra.mxu0 %v551
      %632 = vmatprep.subr.mxu0 0.0
      %633 = vmatpush1.msra.mxu0 %v550
      %634 = vmatprep.subr.mxu0 0.0
      %635 = vmatpush1.msra.mxu0 %v549
      %636 = vmatprep.subr.mxu0 0.0
      %637 = vmatpush1.msra.mxu0 %v548
      %638 = vmatprep.subr.mxu0 0.0
      %639 = vmatpush2.msra.mxu0 0.0
      %640 = vmatprep.subr.mxu0 0.0
      %641 = vmatpush2.msra.mxu0 0.0
      %642 = vmatprep.subr.mxu0 0.0
      %643 = vmatpush2.msra.mxu0 0.0
      %644 = vmatprep.subr.mxu0 0.0
      %645 = vmatpush2.msra.mxu0 0.0
      %646 = vmatprep.subr.mxu0 0.0
      %647 = vmatpush2.msra.mxu0 0.0
      %648 = vmatprep.subr.mxu0 0.0
      %649 = vmatpush2.msra.mxu0 0.0
      %650 = vmatprep.subr.mxu0 0.0
      %651 = vmatpush2.msra.mxu0 0.0
      %652 = vmatprep.subr.mxu0 0.0
      %653 = vmatpush2.msra.mxu0 0.0
      %654 = vmatprep.subr.mxu0 0.0
      %655 = vmatpush2.msra.mxu0 0.0
      %656 = vmatprep.subr.mxu0 0.0
      %657 = vmatpush2.msra.mxu0 0.0
      %658 = vmatprep.subr.mxu0 0.0
      %659 = vmatpush2.msra.mxu0 0.0
      %660 = vmatprep.subr.mxu0 0.0
      %661 = vmatpush2.msra.mxu0 0.0
      %662 = vmatprep.subr.mxu0 0.0
      %663 = vmatpush2.msra.mxu0 0.0
      %664 = vmatprep.subr.mxu0 0.0
      %665 = vmatpush2.msra.mxu0 0.0
      %666 = vmatprep.subr.mxu0 0.0
      %667 = vmatpush2.msra.mxu0 0.0
      %668 = vmatprep.subr.mxu0 0.0
      %669 = vmatpush2.msra.mxu0 0.0
      %670 = vmatprep.mubr.f32.mxu0 0.0
      %671 = vmatmul.mubr.f32.gmra.mxu0 %v559
      %v672 = vpop.f32.mrf.mxu0
      %v673 = vadd.f32 %v556, %v672
      %v674 = vpop.f32.mrf.mxu0
      %675 = vmatprep.mubr.f32.mxu0 0.0
      %676 = vmatmul.mubr.f32.gmra.mxu0 %v562
      %v677 = vpop.f32.mrf.mxu0
      %v678 = vadd.f32 %v556, %v677
      %v679 = vpop.f32.mrf.mxu0
      %680 = vmatprep.mubr.f32.mxu0 0.0
      %681 = vmatmul.mubr.f32.gmra.mxu0 %v565
      %v682 = vpop.f32.mrf.mxu0
      %v683 = vadd.f32 %v556, %v682
      %v684 = vpop.f32.mrf.mxu0
      %685 = vmatprep.mubr.f32.mxu0 0.0
      %686 = vmatmul.mubr.f32.gmra.mxu0 %v568
      %v687 = vpop.f32.mrf.mxu0
      %v688 = vadd.f32 %v556, %v687
      %v689 = vpop.f32.mrf.mxu0
      %690 = vmatprep.mubr.f32.mxu0 0.0
      %691 = vmatmul.mubr.f32.gmra.mxu0 %v571
      %v692 = vpop.f32.mrf.mxu0
      %v693 = vadd.f32 %v556, %v692
      %v694 = vpop.f32.mrf.mxu0
      %695 = vmatprep.mubr.f32.mxu0 0.0
      %696 = vmatmul.mubr.f32.gmra.mxu0 %v574
      %v697 = vpop.f32.mrf.mxu0
      %v698 = vadd.f32 %v556, %v697
      %v699 = vpop.f32.mrf.mxu0
      %700 = vmatprep.mubr.f32.mxu0 0.0
      %701 = vmatmul.mubr.f32.gmra.mxu0 %v577
      %v702 = vpop.f32.mrf.mxu0
      %v703 = vadd.f32 %v556, %v702
      %v704 = vpop.f32.mrf.mxu0
      %705 = vmatprep.mubr.f32.mxu0 0.0
      %706 = vmatmul.mubr.f32.gmra.mxu0 %v580
      %v707 = vpop.f32.mrf.mxu0
      %v708 = vadd.f32 %v556, %v707
      %v709 = vpop.f32.mrf.mxu0
      %710 = vmatprep.mubr.f32.mxu0 0.0
      %711 = vmatmul.mubr.f32.gmra.mxu0 %v583
      %v712 = vpop.f32.mrf.mxu0
      %v713 = vadd.f32 %v556, %v712
      %v714 = vpop.f32.mrf.mxu0
      %715 = vmatprep.mubr.f32.mxu0 0.0
      %716 = vmatmul.mubr.f32.gmra.mxu0 %v586
      %v717 = vpop.f32.mrf.mxu0
      %v718 = vadd.f32 %v556, %v717
      %v719 = vpop.f32.mrf.mxu0
      %720 = vmatprep.mubr.f32.mxu0 0.0
      %721 = vmatmul.mubr.f32.gmra.mxu0 %v589
      %v722 = vpop.f32.mrf.mxu0
      %v723 = vadd.f32 %v556, %v722
      %v724 = vpop.f32.mrf.mxu0
      %725 = vmatprep.mubr.f32.mxu0 0.0
      %726 = vmatmul.mubr.f32.gmra.mxu0 %v592
      %v727 = vpop.f32.mrf.mxu0
      %v728 = vadd.f32 %v556, %v727
      %v729 = vpop.f32.mrf.mxu0
      %730 = vmatprep.mubr.f32.mxu0 0.0
      %731 = vmatmul.mubr.f32.gmra.mxu0 %v595
      %v732 = vpop.f32.mrf.mxu0
      %v733 = vadd.f32 %v556, %v732
      %v734 = vpop.f32.mrf.mxu0
      %735 = vmatprep.mubr.f32.mxu0 0.0
      %736 = vmatmul.mubr.f32.gmra.mxu0 %v598
      %v737 = vpop.f32.mrf.mxu0
      %v738 = vadd.f32 %v556, %v737
      %v739 = vpop.f32.mrf.mxu0
      %740 = vmatprep.mubr.f32.mxu0 0.0
      %741 = vmatmul.mubr.f32.gmra.mxu0 %v601
      %v742 = vpop.f32.mrf.mxu0
      %v743 = vadd.f32 %v556, %v742
      %v744 = vpop.f32.mrf.mxu0
      %745 = vmatprep.mubr.f32.mxu0 0.0
      %746 = vmatmul.mubr.f32.gmra.mxu0 %v604
      %v747 = vpop.f32.mrf.mxu0
      %v748 = vadd.f32 %v556, %v747
      %v749 = vpop.f32.mrf.mxu0
      %750 = vdwg.mxu0
      %v751 = vmax.f32 %v673, 0.0
      %v752 = vmax.f32 %v678, 0.0
      %v753 = vmax.f32 %v683, 0.0
      %v754 = vmax.f32 %v688, 0.0
      %v755 = vmax.f32 %v693, 0.0
      %v756 = vmax.f32 %v698, 0.0
      %v757 = vmax.f32 %v703, 0.0
      %v758 = vmax.f32 %v708, 0.0
      %v759 = vmax.f32 %v713, 0.0
      %v760 = vmax.f32 %v718, 0.0
      %v761 = vmax.f32 %v723, 0.0
      %v762 = vmax.f32 %v728, 0.0
      %v763 = vmax.f32 %v733, 0.0
      %v764 = vmax.f32 %v738, 0.0
      %v765 = vmax.f32 %v743, 0.0
      %v766 = vmax.f32 %v748, 0.0
      %v767 = vld [vmem:[%s5] sm:$0xff]
      %v768 = vld [vmem:[%s5 + $0x8] sm:$0xff]
      %v769 = vld [vmem:[%s5 + $0x10] sm:$0xff]
      %v770 = vld [vmem:[%s5 + $0x18] sm:$0xff]
      %v771 = vld [vmem:[%s6] sm:$0x1]
      %v772 = vlaneseq
      %v773 = vshrl.u32 %v772, 7
      %v774 = vsub.s32 0, %v773
      %v775 = vrot.slane %v771, %v774
      %v777 = vsel %vm557, %v751, 0
      %v780 = vsel %vm557, %v752, 0
      %v783 = vsel %vm557, %v753, 0
      %v786 = vsel %vm557, %v754, 0
      %v789 = vsel %vm557, %v755, 0
      %v792 = vsel %vm557, %v756, 0
      %v795 = vsel %vm557, %v757, 0
      %v798 = vsel %vm557, %v758, 0
      %v801 = vsel %vm557, %v759, 0
      %v804 = vsel %vm557, %v760, 0
      %v807 = vsel %vm557, %v761, 0
      %v810 = vsel %vm557, %v762, 0
      %v813 = vsel %vm557, %v763, 0
      %v816 = vsel %vm557, %v764, 0
      %v819 = vsel %vm557, %v765, 0
      %v822 = vsel %vm557, %v766, 0
      %824 = vmatprep.subr.mxu0 0.0
      %825 = vmatpush1.msra.mxu0 0.0
      %826 = vmatprep.subr.mxu0 0.0
      %827 = vmatpush1.msra.mxu0 0.0
      %828 = vmatprep.subr.mxu0 0.0
      %829 = vmatpush1.msra.mxu0 0.0
      %830 = vmatprep.subr.mxu0 0.0
      %831 = vmatpush1.msra.mxu0 0.0
      %832 = vmatprep.subr.mxu0 0.0
      %833 = vmatpush1.msra.mxu0 0.0
      %834 = vmatprep.subr.mxu0 0.0
      %835 = vmatpush1.msra.mxu0 0.0
      %836 = vmatprep.subr.mxu0 0.0
      %837 = vmatpush1.msra.mxu0 0.0
      %838 = vmatprep.subr.mxu0 0.0
      %839 = vmatpush1.msra.mxu0 0.0
      %840 = vmatprep.subr.mxu0 0.0
      %841 = vmatpush1.msra.mxu0 0.0
      %842 = vmatprep.subr.mxu0 0.0
      %843 = vmatpush1.msra.mxu0 0.0
      %844 = vmatprep.subr.mxu0 0.0
      %845 = vmatpush1.msra.mxu0 0.0
      %846 = vmatprep.subr.mxu0 0.0
      %847 = vmatpush1.msra.mxu0 0.0
      %848 = vmatprep.subr.mxu0 0.0
      %849 = vmatpush1.msra.mxu0 %v770
      %850 = vmatprep.subr.mxu0 0.0
      %851 = vmatpush1.msra.mxu0 %v769
      %852 = vmatprep.subr.mxu0 0.0
      %853 = vmatpush1.msra.mxu0 %v768
      %854 = vmatprep.subr.mxu0 0.0
      %855 = vmatpush1.msra.mxu0 %v767
      %856 = vmatprep.subr.mxu0 0.0
      %857 = vmatpush2.msra.mxu0 0.0
      %858 = vmatprep.subr.mxu0 0.0
      %859 = vmatpush2.msra.mxu0 0.0
      %860 = vmatprep.subr.mxu0 0.0
      %861 = vmatpush2.msra.mxu0 0.0
      %862 = vmatprep.subr.mxu0 0.0
      %863 = vmatpush2.msra.mxu0 0.0
      %864 = vmatprep.subr.mxu0 0.0
      %865 = vmatpush2.msra.mxu0 0.0
      %866 = vmatprep.subr.mxu0 0.0
      %867 = vmatpush2.msra.mxu0 0.0
      %868 = vmatprep.subr.mxu0 0.0
      %869 = vmatpush2.msra.mxu0 0.0
      %870 = vmatprep.subr.mxu0 0.0
      %871 = vmatpush2.msra.mxu0 0.0
      %872 = vmatprep.subr.mxu0 0.0
      %873 = vmatpush2.msra.mxu0 0.0
      %874 = vmatprep.subr.mxu0 0.0
      %875 = vmatpush2.msra.mxu0 0.0
      %876 = vmatprep.subr.mxu0 0.0
      %877 = vmatpush2.msra.mxu0 0.0
      %878 = vmatprep.subr.mxu0 0.0
      %879 = vmatpush2.msra.mxu0 0.0
      %880 = vmatprep.subr.mxu0 0.0
      %881 = vmatpush2.msra.mxu0 0.0
      %882 = vmatprep.subr.mxu0 0.0
      %883 = vmatpush2.msra.mxu0 0.0
      %884 = vmatprep.subr.mxu0 0.0
      %885 = vmatpush2.msra.mxu0 0.0
      %886 = vmatprep.subr.mxu0 0.0
      %887 = vmatpush2.msra.mxu0 0.0
      %888 = vmatprep.mubr.f32.mxu0 0.0
      %889 = vmatmul.mubr.f32.gmra.mxu0 %v777
      %v890 = vpop.f32.mrf.mxu0
      %v891 = vadd.f32 %v775, %v890
      %v892 = vpop.f32.mrf.mxu0
      %893 = vmatprep.mubr.f32.mxu0 0.0
      %894 = vmatmul.mubr.f32.gmra.mxu0 %v780
      %v895 = vpop.f32.mrf.mxu0
      %v896 = vadd.f32 %v775, %v895
      %v897 = vpop.f32.mrf.mxu0
      %898 = vmatprep.mubr.f32.mxu0 0.0
      %899 = vmatmul.mubr.f32.gmra.mxu0 %v783
      %v900 = vpop.f32.mrf.mxu0
      %v901 = vadd.f32 %v775, %v900
      %v902 = vpop.f32.mrf.mxu0
      %903 = vmatprep.mubr.f32.mxu0 0.0
      %904 = vmatmul.mubr.f32.gmra.mxu0 %v786
      %v905 = vpop.f32.mrf.mxu0
      %v906 = vadd.f32 %v775, %v905
      %v907 = vpop.f32.mrf.mxu0
      %908 = vmatprep.mubr.f32.mxu0 0.0
      %909 = vmatmul.mubr.f32.gmra.mxu0 %v789
      %v910 = vpop.f32.mrf.mxu0
      %v911 = vadd.f32 %v775, %v910
      %v912 = vpop.f32.mrf.mxu0
      %913 = vmatprep.mubr.f32.mxu0 0.0
      %914 = vmatmul.mubr.f32.gmra.mxu0 %v792
      %v915 = vpop.f32.mrf.mxu0
      %v916 = vadd.f32 %v775, %v915
      %v917 = vpop.f32.mrf.mxu0
      %918 = vmatprep.mubr.f32.mxu0 0.0
      %919 = vmatmul.mubr.f32.gmra.mxu0 %v795
      %v920 = vpop.f32.mrf.mxu0
      %v921 = vadd.f32 %v775, %v920
      %v922 = vpop.f32.mrf.mxu0
      %923 = vmatprep.mubr.f32.mxu0 0.0
      %924 = vmatmul.mubr.f32.gmra.mxu0 %v798
      %v925 = vpop.f32.mrf.mxu0
      %v926 = vadd.f32 %v775, %v925
      %v927 = vpop.f32.mrf.mxu0
      %928 = vmatprep.mubr.f32.mxu0 0.0
      %929 = vmatmul.mubr.f32.gmra.mxu0 %v801
      %v930 = vpop.f32.mrf.mxu0
      %v931 = vadd.f32 %v775, %v930
      %v932 = vpop.f32.mrf.mxu0
      %933 = vmatprep.mubr.f32.mxu0 0.0
      %934 = vmatmul.mubr.f32.gmra.mxu0 %v804
      %v935 = vpop.f32.mrf.mxu0
      %v936 = vadd.f32 %v775, %v935
      %v937 = vpop.f32.mrf.mxu0
      %938 = vmatprep.mubr.f32.mxu0 0.0
      %939 = vmatmul.mubr.f32.gmra.mxu0 %v807
      %v940 = vpop.f32.mrf.mxu0
      %v941 = vadd.f32 %v775, %v940
      %v942 = vpop.f32.mrf.mxu0
      %943 = vmatprep.mubr.f32.mxu0 0.0
      %944 = vmatmul.mubr.f32.gmra.mxu0 %v810
      %v945 = vpop.f32.mrf.mxu0
      %v946 = vadd.f32 %v775, %v945
      %v947 = vpop.f32.mrf.mxu0
      %948 = vmatprep.mubr.f32.mxu0 0.0
      %949 = vmatmul.mubr.f32.gmra.mxu0 %v813
      %v950 = vpop.f32.mrf.mxu0
      %v951 = vadd.f32 %v775, %v950
      %v952 = vpop.f32.mrf.mxu0
      %953 = vmatprep.mubr.f32.mxu0 0.0
      %954 = vmatmul.mubr.f32.gmra.mxu0 %v816
      %v955 = vpop.f32.mrf.mxu0
      %v956 = vadd.f32 %v775, %v955
      %v957 = vpop.f32.mrf.mxu0
      %958 = vmatprep.mubr.f32.mxu0 0.0
      %959 = vmatmul.mubr.f32.gmra.mxu0 %v819
      %v960 = vpop.f32.mrf.mxu0
      %v961 = vadd.f32 %v775, %v960
      %v962 = vpop.f32.mrf.mxu0
      %963 = vmatprep.mubr.f32.mxu0 0.0
      %964 = vmatmul.mubr.f32.gmra.mxu0 %v822
      %v965 = vpop.f32.mrf.mxu0
      %v966 = vadd.f32 %v775, %v965
      %v967 = vpop.f32.mrf.mxu0
      %968 = vdwg.mxu0
      %v969 = vadd.f32 %v309, %v891
      %v970 = vadd.f32 %v310, %v896
      %v971 = vadd.f32 %v311, %v901
      %v972 = vadd.f32 %v312, %v906
      %v973 = vadd.f32 %v313, %v911
      %v974 = vadd.f32 %v314, %v916
      %v975 = vadd.f32 %v315, %v921
      %v976 = vadd.f32 %v316, %v926
      %v977 = vadd.f32 %v317, %v931
      %v978 = vadd.f32 %v318, %v936
      %v979 = vadd.f32 %v319, %v941
      %v980 = vadd.f32 %v320, %v946
      %v981 = vadd.f32 %v321, %v951
      %v982 = vadd.f32 %v322, %v956
      %v983 = vadd.f32 %v323, %v961
      %v984 = vadd.f32 %v324, %v966
      %s985 = scalar_lea.vmem %s1, 64
      %v986 = vld [vmem:[%s985] sm:$0xff]
      %v987 = vld [vmem:[%s985 + $0x8] sm:$0xff]
      %v988 = vld [vmem:[%s985 + $0x10] sm:$0xff]
      %v989 = vld [vmem:[%s985 + $0x18] sm:$0xff]
      %v990 = vld [vmem:[%s985 + $0x20] sm:$0xff]
      %v991 = vld [vmem:[%s985 + $0x28] sm:$0xff]
      %v992 = vld [vmem:[%s985 + $0x30] sm:$0xff]
      %v993 = vld [vmem:[%s985 + $0x38] sm:$0xff]
      %v994 = vld [vmem:[%s2 + $0x1] sm:$0x1]
      %v995 = vlaneseq
      %v996 = vshrl.u32 %v995, 7
      %v997 = vsub.s32 0, %v996
      %v998 = vrot.slane %v994, %v997
      %v1000 = vsel %vm338, %v969, 0
      %v1003 = vsel %vm338, %v970, 0
      %v1006 = vsel %vm338, %v971, 0
      %v1009 = vsel %vm338, %v972, 0
      %v1012 = vsel %vm338, %v973, 0
      %v1015 = vsel %vm338, %v974, 0
      %v1018 = vsel %vm338, %v975, 0
      %v1021 = vsel %vm338, %v976, 0
      %v1024 = vsel %vm338, %v977, 0
      %v1027 = vsel %vm338, %v978, 0
      %v1030 = vsel %vm338, %v979, 0
      %v1033 = vsel %vm338, %v980, 0
      %v1036 = vsel %vm338, %v981, 0
      %v1039 = vsel %vm338, %v982, 0
      %v1042 = vsel %vm338, %v983, 0
      %v1045 = vsel %vm338, %v984, 0
      %1047 = vmatprep.subr.mxu0 0.0
      %1048 = vmatpush1.msra.mxu0 0.0
      %1049 = vmatprep.subr.mxu0 0.0
      %1050 = vmatpush1.msra.mxu0 0.0
      %1051 = vmatprep.subr.mxu0 0.0
      %1052 = vmatpush1.msra.mxu0 0.0
      %1053 = vmatprep.subr.mxu0 0.0
      %1054 = vmatpush1.msra.mxu0 0.0
      %1055 = vmatprep.subr.mxu0 0.0
      %1056 = vmatpush1.msra.mxu0 0.0
      %1057 = vmatprep.subr.mxu0 0.0
      %1058 = vmatpush1.msra.mxu0 0.0
      %1059 = vmatprep.subr.mxu0 0.0
      %1060 = vmatpush1.msra.mxu0 0.0
      %1061 = vmatprep.subr.mxu0 0.0
      %1062 = vmatpush1.msra.mxu0 0.0
      %1063 = vmatprep.subr.mxu0 0.0
      %1064 = vmatpush1.msra.mxu0 %v993
      %1065 = vmatprep.subr.mxu0 0.0
      %1066 = vmatpush1.msra.mxu0 %v992
      %1067 = vmatprep.subr.mxu0 0.0
      %1068 = vmatpush1.msra.mxu0 %v991
      %1069 = vmatprep.subr.mxu0 0.0
      %1070 = vmatpush1.msra.mxu0 %v990
      %1071 = vmatprep.subr.mxu0 0.0
      %1072 = vmatpush1.msra.mxu0 %v989
      %1073 = vmatprep.subr.mxu0 0.0
      %1074 = vmatpush1.msra.mxu0 %v988
      %1075 = vmatprep.subr.mxu0 0.0
      %1076 = vmatpush1.msra.mxu0 %v987
      %1077 = vmatprep.subr.mxu0 0.0
      %1078 = vmatpush1.msra.mxu0 %v986
      %1079 = vmatprep.subr.mxu0 0.0
      %1080 = vmatpush2.msra.mxu0 0.0
      %1081 = vmatprep.subr.mxu0 0.0
      %1082 = vmatpush2.msra.mxu0 0.0
      %1083 = vmatprep.subr.mxu0 0.0
      %1084 = vmatpush2.msra.mxu0 0.0
      %1085 = vmatprep.subr.mxu0 0.0
      %1086 = vmatpush2.msra.mxu0 0.0
      %1087 = vmatprep.subr.mxu0 0.0
      %1088 = vmatpush2.msra.mxu0 0.0
      %1089 = vmatprep.subr.mxu0 0.0
      %1090 = vmatpush2.msra.mxu0 0.0
      %1091 = vmatprep.subr.mxu0 0.0
      %1092 = vmatpush2.msra.mxu0 0.0
      %1093 = vmatprep.subr.mxu0 0.0
      %1094 = vmatpush2.msra.mxu0 0.0
      %1095 = vmatprep.subr.mxu0 0.0
      %1096 = vmatpush2.msra.mxu0 0.0
      %1097 = vmatprep.subr.mxu0 0.0
      %1098 = vmatpush2.msra.mxu0 0.0
      %1099 = vmatprep.subr.mxu0 0.0
      %1100 = vmatpush2.msra.mxu0 0.0
      %1101 = vmatprep.subr.mxu0 0.0
      %1102 = vmatpush2.msra.mxu0 0.0
      %1103 = vmatprep.subr.mxu0 0.0
      %1104 = vmatpush2.msra.mxu0 0.0
      %1105 = vmatprep.subr.mxu0 0.0
      %1106 = vmatpush2.msra.mxu0 0.0
      %1107 = vmatprep.subr.mxu0 0.0
      %1108 = vmatpush2.msra.mxu0 0.0
      %1109 = vmatprep.subr.mxu0 0.0
      %1110 = vmatpush2.msra.mxu0 0.0
      %1111 = vmatprep.mubr.f32.mxu0 0.0
      %1112 = vmatmul.mubr.f32.gmra.mxu0 %v1000
      %v1113 = vpop.f32.mrf.mxu0
      %v1114 = vadd.f32 %v998, %v1113
      %v1115 = vpop.f32.mrf.mxu0
      %1116 = vmatprep.mubr.f32.mxu0 0.0
      %1117 = vmatmul.mubr.f32.gmra.mxu0 %v1003
      %v1118 = vpop.f32.mrf.mxu0
      %v1119 = vadd.f32 %v998, %v1118
      %v1120 = vpop.f32.mrf.mxu0
      %1121 = vmatprep.mubr.f32.mxu0 0.0
      %1122 = vmatmul.mubr.f32.gmra.mxu0 %v1006
      %v1123 = vpop.f32.mrf.mxu0
      %v1124 = vadd.f32 %v998, %v1123
      %v1125 = vpop.f32.mrf.mxu0
      %1126 = vmatprep.mubr.f32.mxu0 0.0
      %1127 = vmatmul.mubr.f32.gmra.mxu0 %v1009
      %v1128 = vpop.f32.mrf.mxu0
      %v1129 = vadd.f32 %v998, %v1128
      %v1130 = vpop.f32.mrf.mxu0
      %1131 = vmatprep.mubr.f32.mxu0 0.0
      %1132 = vmatmul.mubr.f32.gmra.mxu0 %v1012
      %v1133 = vpop.f32.mrf.mxu0
      %v1134 = vadd.f32 %v998, %v1133
      %v1135 = vpop.f32.mrf.mxu0
      %1136 = vmatprep.mubr.f32.mxu0 0.0
      %1137 = vmatmul.mubr.f32.gmra.mxu0 %v1015
      %v1138 = vpop.f32.mrf.mxu0
      %v1139 = vadd.f32 %v998, %v1138
      %v1140 = vpop.f32.mrf.mxu0
      %1141 = vmatprep.mubr.f32.mxu0 0.0
      %1142 = vmatmul.mubr.f32.gmra.mxu0 %v1018
      %v1143 = vpop.f32.mrf.mxu0
      %v1144 = vadd.f32 %v998, %v1143
      %v1145 = vpop.f32.mrf.mxu0
      %1146 = vmatprep.mubr.f32.mxu0 0.0
      %1147 = vmatmul.mubr.f32.gmra.mxu0 %v1021
      %v1148 = vpop.f32.mrf.mxu0
      %v1149 = vadd.f32 %v998, %v1148
      %v1150 = vpop.f32.mrf.mxu0
      %1151 = vmatprep.mubr.f32.mxu0 0.0
      %1152 = vmatmul.mubr.f32.gmra.mxu0 %v1024
      %v1153 = vpop.f32.mrf.mxu0
      %v1154 = vadd.f32 %v998, %v1153
      %v1155 = vpop.f32.mrf.mxu0
      %1156 = vmatprep.mubr.f32.mxu0 0.0
      %1157 = vmatmul.mubr.f32.gmra.mxu0 %v1027
      %v1158 = vpop.f32.mrf.mxu0
      %v1159 = vadd.f32 %v998, %v1158
      %v1160 = vpop.f32.mrf.mxu0
      %1161 = vmatprep.mubr.f32.mxu0 0.0
      %1162 = vmatmul.mubr.f32.gmra.mxu0 %v1030
      %v1163 = vpop.f32.mrf.mxu0
      %v1164 = vadd.f32 %v998, %v1163
      %v1165 = vpop.f32.mrf.mxu0
      %1166 = vmatprep.mubr.f32.mxu0 0.0
      %1167 = vmatmul.mubr.f32.gmra.mxu0 %v1033
      %v1168 = vpop.f32.mrf.mxu0
      %v1169 = vadd.f32 %v998, %v1168
      %v1170 = vpop.f32.mrf.mxu0
      %1171 = vmatprep.mubr.f32.mxu0 0.0
      %1172 = vmatmul.mubr.f32.gmra.mxu0 %v1036
      %v1173 = vpop.f32.mrf.mxu0
      %v1174 = vadd.f32 %v998, %v1173
      %v1175 = vpop.f32.mrf.mxu0
      %1176 = vmatprep.mubr.f32.mxu0 0.0
      %1177 = vmatmul.mubr.f32.gmra.mxu0 %v1039
      %v1178 = vpop.f32.mrf.mxu0
      %v1179 = vadd.f32 %v998, %v1178
      %v1180 = vpop.f32.mrf.mxu0
      %1181 = vmatprep.mubr.f32.mxu0 0.0
      %1182 = vmatmul.mubr.f32.gmra.mxu0 %v1042
      %v1183 = vpop.f32.mrf.mxu0
      %v1184 = vadd.f32 %v998, %v1183
      %v1185 = vpop.f32.mrf.mxu0
      %1186 = vmatprep.mubr.f32.mxu0 0.0
      %1187 = vmatmul.mubr.f32.gmra.mxu0 %v1045
      %v1188 = vpop.f32.mrf.mxu0
      %v1189 = vadd.f32 %v998, %v1188
      %v1190 = vpop.f32.mrf.mxu0
      %1191 = vdwg.mxu0
      %v1192 = vmax.f32 %v1114, 0.0
      %v1193 = vmax.f32 %v1119, 0.0
      %v1194 = vmax.f32 %v1124, 0.0
      %v1195 = vmax.f32 %v1129, 0.0
      %v1196 = vmax.f32 %v1134, 0.0
      %v1197 = vmax.f32 %v1139, 0.0
      %v1198 = vmax.f32 %v1144, 0.0
      %v1199 = vmax.f32 %v1149, 0.0
      %v1200 = vmax.f32 %v1154, 0.0
      %v1201 = vmax.f32 %v1159, 0.0
      %v1202 = vmax.f32 %v1164, 0.0
      %v1203 = vmax.f32 %v1169, 0.0
      %v1204 = vmax.f32 %v1174, 0.0
      %v1205 = vmax.f32 %v1179, 0.0
      %v1206 = vmax.f32 %v1184, 0.0
      %v1207 = vmax.f32 %v1189, 0.0
      %s1208 = scalar_lea.vmem %s3, 32
      %v1209 = vld [vmem:[%s1208] sm:$0xff]
      %v1210 = vld [vmem:[%s1208 + $0x8] sm:$0xff]
      %v1211 = vld [vmem:[%s1208 + $0x10] sm:$0xff]
      %v1212 = vld [vmem:[%s1208 + $0x18] sm:$0xff]
      %v1213 = vld [vmem:[%s4 + $0x1] sm:$0x1]
      %v1214 = vlaneseq
      %v1215 = vshrl.u32 %v1214, 7
      %v1216 = vsub.s32 0, %v1215
      %v1217 = vrot.slane %v1213, %v1216
      %v1219 = vsel %vm557, %v1192, 0
      %v1222 = vsel %vm557, %v1193, 0
      %v1225 = vsel %vm557, %v1194, 0
      %v1228 = vsel %vm557, %v1195, 0
      %v1231 = vsel %vm557, %v1196, 0
      %v1234 = vsel %vm557, %v1197, 0
      %v1237 = vsel %vm557, %v1198, 0
      %v1240 = vsel %vm557, %v1199, 0
      %v1243 = vsel %vm557, %v1200, 0
      %v1246 = vsel %vm557, %v1201, 0
      %v1249 = vsel %vm557, %v1202, 0
      %v1252 = vsel %vm557, %v1203, 0
      %v1255 = vsel %vm557, %v1204, 0
      %v1258 = vsel %vm557, %v1205, 0
      %v1261 = vsel %vm557, %v1206, 0
      %v1264 = vsel %vm557, %v1207, 0
      %1266 = vmatprep.subr.mxu0 0.0
      %1267 = vmatpush1.msra.mxu0 0.0
      %1268 = vmatprep.subr.mxu0 0.0
      %1269 = vmatpush1.msra.mxu0 0.0
      %1270 = vmatprep.subr.mxu0 0.0
      %1271 = vmatpush1.msra.mxu0 0.0
      %1272 = vmatprep.subr.mxu0 0.0
      %1273 = vmatpush1.msra.mxu0 0.0
      %1274 = vmatprep.subr.mxu0 0.0
      %1275 = vmatpush1.msra.mxu0 0.0
      %1276 = vmatprep.subr.mxu0 0.0
      %1277 = vmatpush1.msra.mxu0 0.0
      %1278 = vmatprep.subr.mxu0 0.0
      %1279 = vmatpush1.msra.mxu0 0.0
      %1280 = vmatprep.subr.mxu0 0.0
      %1281 = vmatpush1.msra.mxu0 0.0
      %1282 = vmatprep.subr.mxu0 0.0
      %1283 = vmatpush1.msra.mxu0 0.0
      %1284 = vmatprep.subr.mxu0 0.0
      %1285 = vmatpush1.msra.mxu0 0.0
      %1286 = vmatprep.subr.mxu0 0.0
      %1287 = vmatpush1.msra.mxu0 0.0
      %1288 = vmatprep.subr.mxu0 0.0
      %1289 = vmatpush1.msra.mxu0 0.0
      %1290 = vmatprep.subr.mxu0 0.0
      %1291 = vmatpush1.msra.mxu0 %v1212
      %1292 = vmatprep.subr.mxu0 0.0
      %1293 = vmatpush1.msra.mxu0 %v1211
      %1294 = vmatprep.subr.mxu0 0.0
      %1295 = vmatpush1.msra.mxu0 %v1210
      %1296 = vmatprep.subr.mxu0 0.0
      %1297 = vmatpush1.msra.mxu0 %v1209
      %1298 = vmatprep.subr.mxu0 0.0
      %1299 = vmatpush2.msra.mxu0 0.0
      %1300 = vmatprep.subr.mxu0 0.0
      %1301 = vmatpush2.msra.mxu0 0.0
      %1302 = vmatprep.subr.mxu0 0.0
      %1303 = vmatpush2.msra.mxu0 0.0
      %1304 = vmatprep.subr.mxu0 0.0
      %1305 = vmatpush2.msra.mxu0 0.0
      %1306 = vmatprep.subr.mxu0 0.0
      %1307 = vmatpush2.msra.mxu0 0.0
      %1308 = vmatprep.subr.mxu0 0.0
      %1309 = vmatpush2.msra.mxu0 0.0
      %1310 = vmatprep.subr.mxu0 0.0
      %1311 = vmatpush2.msra.mxu0 0.0
      %1312 = vmatprep.subr.mxu0 0.0
      %1313 = vmatpush2.msra.mxu0 0.0
      %1314 = vmatprep.subr.mxu0 0.0
      %1315 = vmatpush2.msra.mxu0 0.0
      %1316 = vmatprep.subr.mxu0 0.0
      %1317 = vmatpush2.msra.mxu0 0.0
      %1318 = vmatprep.subr.mxu0 0.0
      %1319 = vmatpush2.msra.mxu0 0.0
      %1320 = vmatprep.subr.mxu0 0.0
      %1321 = vmatpush2.msra.mxu0 0.0
      %1322 = vmatprep.subr.mxu0 0.0
      %1323 = vmatpush2.msra.mxu0 0.0
      %1324 = vmatprep.subr.mxu0 0.0
      %1325 = vmatpush2.msra.mxu0 0.0
      %1326 = vmatprep.subr.mxu0 0.0
      %1327 = vmatpush2.msra.mxu0 0.0
      %1328 = vmatprep.subr.mxu0 0.0
      %1329 = vmatpush2.msra.mxu0 0.0
      %1330 = vmatprep.mubr.f32.mxu0 0.0
      %1331 = vmatmul.mubr.f32.gmra.mxu0 %v1219
      %v1332 = vpop.f32.mrf.mxu0
      %v1333 = vadd.f32 %v1217, %v1332
      %v1334 = vpop.f32.mrf.mxu0
      %1335 = vmatprep.mubr.f32.mxu0 0.0
      %1336 = vmatmul.mubr.f32.gmra.mxu0 %v1222
      %v1337 = vpop.f32.mrf.mxu0
      %v1338 = vadd.f32 %v1217, %v1337
      %v1339 = vpop.f32.mrf.mxu0
      %1340 = vmatprep.mubr.f32.mxu0 0.0
      %1341 = vmatmul.mubr.f32.gmra.mxu0 %v1225
      %v1342 = vpop.f32.mrf.mxu0
      %v1343 = vadd.f32 %v1217, %v1342
      %v1344 = vpop.f32.mrf.mxu0
      %1345 = vmatprep.mubr.f32.mxu0 0.0
      %1346 = vmatmul.mubr.f32.gmra.mxu0 %v1228
      %v1347 = vpop.f32.mrf.mxu0
      %v1348 = vadd.f32 %v1217, %v1347
      %v1349 = vpop.f32.mrf.mxu0
      %1350 = vmatprep.mubr.f32.mxu0 0.0
      %1351 = vmatmul.mubr.f32.gmra.mxu0 %v1231
      %v1352 = vpop.f32.mrf.mxu0
      %v1353 = vadd.f32 %v1217, %v1352
      %v1354 = vpop.f32.mrf.mxu0
      %1355 = vmatprep.mubr.f32.mxu0 0.0
      %1356 = vmatmul.mubr.f32.gmra.mxu0 %v1234
      %v1357 = vpop.f32.mrf.mxu0
      %v1358 = vadd.f32 %v1217, %v1357
      %v1359 = vpop.f32.mrf.mxu0
      %1360 = vmatprep.mubr.f32.mxu0 0.0
      %1361 = vmatmul.mubr.f32.gmra.mxu0 %v1237
      %v1362 = vpop.f32.mrf.mxu0
      %v1363 = vadd.f32 %v1217, %v1362
      %v1364 = vpop.f32.mrf.mxu0
      %1365 = vmatprep.mubr.f32.mxu0 0.0
      %1366 = vmatmul.mubr.f32.gmra.mxu0 %v1240
      %v1367 = vpop.f32.mrf.mxu0
      %v1368 = vadd.f32 %v1217, %v1367
      %v1369 = vpop.f32.mrf.mxu0
      %1370 = vmatprep.mubr.f32.mxu0 0.0
      %1371 = vmatmul.mubr.f32.gmra.mxu0 %v1243
      %v1372 = vpop.f32.mrf.mxu0
      %v1373 = vadd.f32 %v1217, %v1372
      %v1374 = vpop.f32.mrf.mxu0
      %1375 = vmatprep.mubr.f32.mxu0 0.0
      %1376 = vmatmul.mubr.f32.gmra.mxu0 %v1246
      %v1377 = vpop.f32.mrf.mxu0
      %v1378 = vadd.f32 %v1217, %v1377
      %v1379 = vpop.f32.mrf.mxu0
      %1380 = vmatprep.mubr.f32.mxu0 0.0
      %1381 = vmatmul.mubr.f32.gmra.mxu0 %v1249
      %v1382 = vpop.f32.mrf.mxu0
      %v1383 = vadd.f32 %v1217, %v1382
      %v1384 = vpop.f32.mrf.mxu0
      %1385 = vmatprep.mubr.f32.mxu0 0.0
      %1386 = vmatmul.mubr.f32.gmra.mxu0 %v1252
      %v1387 = vpop.f32.mrf.mxu0
      %v1388 = vadd.f32 %v1217, %v1387
      %v1389 = vpop.f32.mrf.mxu0
      %1390 = vmatprep.mubr.f32.mxu0 0.0
      %1391 = vmatmul.mubr.f32.gmra.mxu0 %v1255
      %v1392 = vpop.f32.mrf.mxu0
      %v1393 = vadd.f32 %v1217, %v1392
      %v1394 = vpop.f32.mrf.mxu0
      %1395 = vmatprep.mubr.f32.mxu0 0.0
      %1396 = vmatmul.mubr.f32.gmra.mxu0 %v1258
      %v1397 = vpop.f32.mrf.mxu0
      %v1398 = vadd.f32 %v1217, %v1397
      %v1399 = vpop.f32.mrf.mxu0
      %1400 = vmatprep.mubr.f32.mxu0 0.0
      %1401 = vmatmul.mubr.f32.gmra.mxu0 %v1261
      %v1402 = vpop.f32.mrf.mxu0
      %v1403 = vadd.f32 %v1217, %v1402
      %v1404 = vpop.f32.mrf.mxu0
      %1405 = vmatprep.mubr.f32.mxu0 0.0
      %1406 = vmatmul.mubr.f32.gmra.mxu0 %v1264
      %v1407 = vpop.f32.mrf.mxu0
      %v1408 = vadd.f32 %v1217, %v1407
      %v1409 = vpop.f32.mrf.mxu0
      %1410 = vdwg.mxu0
      %v1411 = vmax.f32 %v1333, 0.0
      %v1412 = vmax.f32 %v1338, 0.0
      %v1413 = vmax.f32 %v1343, 0.0
      %v1414 = vmax.f32 %v1348, 0.0
      %v1415 = vmax.f32 %v1353, 0.0
      %v1416 = vmax.f32 %v1358, 0.0
      %v1417 = vmax.f32 %v1363, 0.0
      %v1418 = vmax.f32 %v1368, 0.0
      %v1419 = vmax.f32 %v1373, 0.0
      %v1420 = vmax.f32 %v1378, 0.0
      %v1421 = vmax.f32 %v1383, 0.0
      %v1422 = vmax.f32 %v1388, 0.0
      %v1423 = vmax.f32 %v1393, 0.0
      %v1424 = vmax.f32 %v1398, 0.0
      %v1425 = vmax.f32 %v1403, 0.0
      %v1426 = vmax.f32 %v1408, 0.0
      %s1427 = scalar_lea.vmem %s5, 32
      %v1428 = vld [vmem:[%s1427] sm:$0xff]
      %v1429 = vld [vmem:[%s1427 + $0x8] sm:$0xff]
      %v1430 = vld [vmem:[%s1427 + $0x10] sm:$0xff]
      %v1431 = vld [vmem:[%s1427 + $0x18] sm:$0xff]
      %v1432 = vld [vmem:[%s6 + $0x1] sm:$0x1]
      %v1433 = vlaneseq
      %v1434 = vshrl.u32 %v1433, 7
      %v1435 = vsub.s32 0, %v1434
      %v1436 = vrot.slane %v1432, %v1435
      %v1438 = vsel %vm557, %v1411, 0
      %v1441 = vsel %vm557, %v1412, 0
      %v1444 = vsel %vm557, %v1413, 0
      %v1447 = vsel %vm557, %v1414, 0
      %v1450 = vsel %vm557, %v1415, 0
      %v1453 = vsel %vm557, %v1416, 0
      %v1456 = vsel %vm557, %v1417, 0
      %v1459 = vsel %vm557, %v1418, 0
      %v1462 = vsel %vm557, %v1419, 0
      %v1465 = vsel %vm557, %v1420, 0
      %v1468 = vsel %vm557, %v1421, 0
      %v1471 = vsel %vm557, %v1422, 0
      %v1474 = vsel %vm557, %v1423, 0
      %v1477 = vsel %vm557, %v1424, 0
      %v1480 = vsel %vm557, %v1425, 0
      %v1483 = vsel %vm557, %v1426, 0
      %1485 = vmatprep.subr.mxu0 0.0
      %1486 = vmatpush1.msra.mxu0 0.0
      %1487 = vmatprep.subr.mxu0 0.0
      %1488 = vmatpush1.msra.mxu0 0.0
      %1489 = vmatprep.subr.mxu0 0.0
      %1490 = vmatpush1.msra.mxu0 0.0
      %1491 = vmatprep.subr.mxu0 0.0
      %1492 = vmatpush1.msra.mxu0 0.0
      %1493 = vmatprep.subr.mxu0 0.0
      %1494 = vmatpush1.msra.mxu0 0.0
      %1495 = vmatprep.subr.mxu0 0.0
      %1496 = vmatpush1.msra.mxu0 0.0
      %1497 = vmatprep.subr.mxu0 0.0
      %1498 = vmatpush1.msra.mxu0 0.0
      %1499 = vmatprep.subr.mxu0 0.0
      %1500 = vmatpush1.msra.mxu0 0.0
      %1501 = vmatprep.subr.mxu0 0.0
      %1502 = vmatpush1.msra.mxu0 0.0
      %1503 = vmatprep.subr.mxu0 0.0
      %1504 = vmatpush1.msra.mxu0 0.0
      %1505 = vmatprep.subr.mxu0 0.0
      %1506 = vmatpush1.msra.mxu0 0.0
      %1507 = vmatprep.subr.mxu0 0.0
      %1508 = vmatpush1.msra.mxu0 0.0
      %1509 = vmatprep.subr.mxu0 0.0
      %1510 = vmatpush1.msra.mxu0 %v1431
      %1511 = vmatprep.subr.mxu0 0.0
      %1512 = vmatpush1.msra.mxu0 %v1430
      %1513 = vmatprep.subr.mxu0 0.0
      %1514 = vmatpush1.msra.mxu0 %v1429
      %1515 = vmatprep.subr.mxu0 0.0
      %1516 = vmatpush1.msra.mxu0 %v1428
      %1517 = vmatprep.subr.mxu0 0.0
      %1518 = vmatpush2.msra.mxu0 0.0
      %1519 = vmatprep.subr.mxu0 0.0
      %1520 = vmatpush2.msra.mxu0 0.0
      %1521 = vmatprep.subr.mxu0 0.0
      %1522 = vmatpush2.msra.mxu0 0.0
      %1523 = vmatprep.subr.mxu0 0.0
      %1524 = vmatpush2.msra.mxu0 0.0
      %1525 = vmatprep.subr.mxu0 0.0
      %1526 = vmatpush2.msra.mxu0 0.0
      %1527 = vmatprep.subr.mxu0 0.0
      %1528 = vmatpush2.msra.mxu0 0.0
      %1529 = vmatprep.subr.mxu0 0.0
      %1530 = vmatpush2.msra.mxu0 0.0
      %1531 = vmatprep.subr.mxu0 0.0
      %1532 = vmatpush2.msra.mxu0 0.0
      %1533 = vmatprep.subr.mxu0 0.0
      %1534 = vmatpush2.msra.mxu0 0.0
      %1535 = vmatprep.subr.mxu0 0.0
      %1536 = vmatpush2.msra.mxu0 0.0
      %1537 = vmatprep.subr.mxu0 0.0
      %1538 = vmatpush2.msra.mxu0 0.0
      %1539 = vmatprep.subr.mxu0 0.0
      %1540 = vmatpush2.msra.mxu0 0.0
      %1541 = vmatprep.subr.mxu0 0.0
      %1542 = vmatpush2.msra.mxu0 0.0
      %1543 = vmatprep.subr.mxu0 0.0
      %1544 = vmatpush2.msra.mxu0 0.0
      %1545 = vmatprep.subr.mxu0 0.0
      %1546 = vmatpush2.msra.mxu0 0.0
      %1547 = vmatprep.subr.mxu0 0.0
      %1548 = vmatpush2.msra.mxu0 0.0
      %1549 = vmatprep.mubr.f32.mxu0 0.0
      %1550 = vmatmul.mubr.f32.gmra.mxu0 %v1438
      %v1551 = vpop.f32.mrf.mxu0
      %v1552 = vadd.f32 %v1436, %v1551
      %v1553 = vpop.f32.mrf.mxu0
      %1554 = vmatprep.mubr.f32.mxu0 0.0
      %1555 = vmatmul.mubr.f32.gmra.mxu0 %v1441
      %v1556 = vpop.f32.mrf.mxu0
      %v1557 = vadd.f32 %v1436, %v1556
      %v1558 = vpop.f32.mrf.mxu0
      %1559 = vmatprep.mubr.f32.mxu0 0.0
      %1560 = vmatmul.mubr.f32.gmra.mxu0 %v1444
      %v1561 = vpop.f32.mrf.mxu0
      %v1562 = vadd.f32 %v1436, %v1561
      %v1563 = vpop.f32.mrf.mxu0
      %1564 = vmatprep.mubr.f32.mxu0 0.0
      %1565 = vmatmul.mubr.f32.gmra.mxu0 %v1447
      %v1566 = vpop.f32.mrf.mxu0
      %v1567 = vadd.f32 %v1436, %v1566
      %v1568 = vpop.f32.mrf.mxu0
      %1569 = vmatprep.mubr.f32.mxu0 0.0
      %1570 = vmatmul.mubr.f32.gmra.mxu0 %v1450
      %v1571 = vpop.f32.mrf.mxu0
      %v1572 = vadd.f32 %v1436, %v1571
      %v1573 = vpop.f32.mrf.mxu0
      %1574 = vmatprep.mubr.f32.mxu0 0.0
      %1575 = vmatmul.mubr.f32.gmra.mxu0 %v1453
      %v1576 = vpop.f32.mrf.mxu0
      %v1577 = vadd.f32 %v1436, %v1576
      %v1578 = vpop.f32.mrf.mxu0
      %1579 = vmatprep.mubr.f32.mxu0 0.0
      %1580 = vmatmul.mubr.f32.gmra.mxu0 %v1456
      %v1581 = vpop.f32.mrf.mxu0
      %v1582 = vadd.f32 %v1436, %v1581
      %v1583 = vpop.f32.mrf.mxu0
      %1584 = vmatprep.mubr.f32.mxu0 0.0
      %1585 = vmatmul.mubr.f32.gmra.mxu0 %v1459
      %v1586 = vpop.f32.mrf.mxu0
      %v1587 = vadd.f32 %v1436, %v1586
      %v1588 = vpop.f32.mrf.mxu0
      %1589 = vmatprep.mubr.f32.mxu0 0.0
      %1590 = vmatmul.mubr.f32.gmra.mxu0 %v1462
      %v1591 = vpop.f32.mrf.mxu0
      %v1592 = vadd.f32 %v1436, %v1591
      %v1593 = vpop.f32.mrf.mxu0
      %1594 = vmatprep.mubr.f32.mxu0 0.0
      %1595 = vmatmul.mubr.f32.gmra.mxu0 %v1465
      %v1596 = vpop.f32.mrf.mxu0
      %v1597 = vadd.f32 %v1436, %v1596
      %v1598 = vpop.f32.mrf.mxu0
      %1599 = vmatprep.mubr.f32.mxu0 0.0
      %1600 = vmatmul.mubr.f32.gmra.mxu0 %v1468
      %v1601 = vpop.f32.mrf.mxu0
      %v1602 = vadd.f32 %v1436, %v1601
      %v1603 = vpop.f32.mrf.mxu0
      %1604 = vmatprep.mubr.f32.mxu0 0.0
      %1605 = vmatmul.mubr.f32.gmra.mxu0 %v1471
      %v1606 = vpop.f32.mrf.mxu0
      %v1607 = vadd.f32 %v1436, %v1606
      %v1608 = vpop.f32.mrf.mxu0
      %1609 = vmatprep.mubr.f32.mxu0 0.0
      %1610 = vmatmul.mubr.f32.gmra.mxu0 %v1474
      %v1611 = vpop.f32.mrf.mxu0
      %v1612 = vadd.f32 %v1436, %v1611
      %v1613 = vpop.f32.mrf.mxu0
      %1614 = vmatprep.mubr.f32.mxu0 0.0
      %1615 = vmatmul.mubr.f32.gmra.mxu0 %v1477
      %v1616 = vpop.f32.mrf.mxu0
      %v1617 = vadd.f32 %v1436, %v1616
      %v1618 = vpop.f32.mrf.mxu0
      %1619 = vmatprep.mubr.f32.mxu0 0.0
      %1620 = vmatmul.mubr.f32.gmra.mxu0 %v1480
      %v1621 = vpop.f32.mrf.mxu0
      %v1622 = vadd.f32 %v1436, %v1621
      %v1623 = vpop.f32.mrf.mxu0
      %1624 = vmatprep.mubr.f32.mxu0 0.0
      %1625 = vmatmul.mubr.f32.gmra.mxu0 %v1483
      %v1626 = vpop.f32.mrf.mxu0
      %v1627 = vadd.f32 %v1436, %v1626
      %v1628 = vpop.f32.mrf.mxu0
      %1629 = vdwg.mxu0
      %v1630 = vadd.f32 %v969, %v1552
      %v1631 = vadd.f32 %v970, %v1557
      %v1632 = vadd.f32 %v971, %v1562
      %v1633 = vadd.f32 %v972, %v1567
      %v1634 = vadd.f32 %v973, %v1572
      %v1635 = vadd.f32 %v974, %v1577
      %v1636 = vadd.f32 %v975, %v1582
      %v1637 = vadd.f32 %v976, %v1587
      %v1638 = vadd.f32 %v977, %v1592
      %v1639 = vadd.f32 %v978, %v1597
      %v1640 = vadd.f32 %v979, %v1602
      %v1641 = vadd.f32 %v980, %v1607
      %v1642 = vadd.f32 %v981, %v1612
      %v1643 = vadd.f32 %v982, %v1617
      %v1644 = vadd.f32 %v983, %v1622
      %v1645 = vadd.f32 %v984, %v1627
      %s1646 = scalar_lea.vmem %s1, 128
      %v1647 = vld [vmem:[%s1646] sm:$0xff]
      %v1648 = vld [vmem:[%s1646 + $0x8] sm:$0xff]
      %v1649 = vld [vmem:[%s1646 + $0x10] sm:$0xff]
      %v1650 = vld [vmem:[%s1646 + $0x18] sm:$0xff]
      %v1651 = vld [vmem:[%s1646 + $0x20] sm:$0xff]
      %v1652 = vld [vmem:[%s1646 + $0x28] sm:$0xff]
      %v1653 = vld [vmem:[%s1646 + $0x30] sm:$0xff]
      %v1654 = vld [vmem:[%s1646 + $0x38] sm:$0xff]
      %v1655 = vld [vmem:[%s2 + $0x2] sm:$0x1]
      %v1656 = vlaneseq
      %v1657 = vshrl.u32 %v1656, 7
      %v1658 = vsub.s32 0, %v1657
      %v1659 = vrot.slane %v1655, %v1658
      %v1661 = vsel %vm338, %v1630, 0
      %v1664 = vsel %vm338, %v1631, 0
      %v1667 = vsel %vm338, %v1632, 0
      %v1670 = vsel %vm338, %v1633, 0
      %v1673 = vsel %vm338, %v1634, 0
      %v1676 = vsel %vm338, %v1635, 0
      %v1679 = vsel %vm338, %v1636, 0
      %v1682 = vsel %vm338, %v1637, 0
      %v1685 = vsel %vm338, %v1638, 0
      %v1688 = vsel %vm338, %v1639, 0
      %v1691 = vsel %vm338, %v1640, 0
      %v1694 = vsel %vm338, %v1641, 0
      %v1697 = vsel %vm338, %v1642, 0
      %v1700 = vsel %vm338, %v1643, 0
      %v1703 = vsel %vm338, %v1644, 0
      %v1706 = vsel %vm338, %v1645, 0
      %1708 = vmatprep.subr.mxu0 0.0
      %1709 = vmatpush1.msra.mxu0 0.0
      %1710 = vmatprep.subr.mxu0 0.0
      %1711 = vmatpush1.msra.mxu0 0.0
      %1712 = vmatprep.subr.mxu0 0.0
      %1713 = vmatpush1.msra.mxu0 0.0
      %1714 = vmatprep.subr.mxu0 0.0
      %1715 = vmatpush1.msra.mxu0 0.0
      %1716 = vmatprep.subr.mxu0 0.0
      %1717 = vmatpush1.msra.mxu0 0.0
      %1718 = vmatprep.subr.mxu0 0.0
      %1719 = vmatpush1.msra.mxu0 0.0
      %1720 = vmatprep.subr.mxu0 0.0
      %1721 = vmatpush1.msra.mxu0 0.0
      %1722 = vmatprep.subr.mxu0 0.0
      %1723 = vmatpush1.msra.mxu0 0.0
      %1724 = vmatprep.subr.mxu0 0.0
      %1725 = vmatpush1.msra.mxu0 %v1654
      %1726 = vmatprep.subr.mxu0 0.0
      %1727 = vmatpush1.msra.mxu0 %v1653
      %1728 = vmatprep.subr.mxu0 0.0
      %1729 = vmatpush1.msra.mxu0 %v1652
      %1730 = vmatprep.subr.mxu0 0.0
      %1731 = vmatpush1.msra.mxu0 %v1651
      %1732 = vmatprep.subr.mxu0 0.0
      %1733 = vmatpush1.msra.mxu0 %v1650
      %1734 = vmatprep.subr.mxu0 0.0
      %1735 = vmatpush1.msra.mxu0 %v1649
      %1736 = vmatprep.subr.mxu0 0.0
      %1737 = vmatpush1.msra.mxu0 %v1648
      %1738 = vmatprep.subr.mxu0 0.0
      %1739 = vmatpush1.msra.mxu0 %v1647
      %1740 = vmatprep.subr.mxu0 0.0
      %1741 = vmatpush2.msra.mxu0 0.0
      %1742 = vmatprep.subr.mxu0 0.0
      %1743 = vmatpush2.msra.mxu0 0.0
      %1744 = vmatprep.subr.mxu0 0.0
      %1745 = vmatpush2.msra.mxu0 0.0
      %1746 = vmatprep.subr.mxu0 0.0
      %1747 = vmatpush2.msra.mxu0 0.0
      %1748 = vmatprep.subr.mxu0 0.0
      %1749 = vmatpush2.msra.mxu0 0.0
      %1750 = vmatprep.subr.mxu0 0.0
      %1751 = vmatpush2.msra.mxu0 0.0
      %1752 = vmatprep.subr.mxu0 0.0
      %1753 = vmatpush2.msra.mxu0 0.0
      %1754 = vmatprep.subr.mxu0 0.0
      %1755 = vmatpush2.msra.mxu0 0.0
      %1756 = vmatprep.subr.mxu0 0.0
      %1757 = vmatpush2.msra.mxu0 0.0
      %1758 = vmatprep.subr.mxu0 0.0
      %1759 = vmatpush2.msra.mxu0 0.0
      %1760 = vmatprep.subr.mxu0 0.0
      %1761 = vmatpush2.msra.mxu0 0.0
      %1762 = vmatprep.subr.mxu0 0.0
      %1763 = vmatpush2.msra.mxu0 0.0
      %1764 = vmatprep.subr.mxu0 0.0
      %1765 = vmatpush2.msra.mxu0 0.0
      %1766 = vmatprep.subr.mxu0 0.0
      %1767 = vmatpush2.msra.mxu0 0.0
      %1768 = vmatprep.subr.mxu0 0.0
      %1769 = vmatpush2.msra.mxu0 0.0
      %1770 = vmatprep.subr.mxu0 0.0
      %1771 = vmatpush2.msra.mxu0 0.0
      %1772 = vmatprep.mubr.f32.mxu0 0.0
      %1773 = vmatmul.mubr.f32.gmra.mxu0 %v1661
      %v1774 = vpop.f32.mrf.mxu0
      %v1775 = vadd.f32 %v1659, %v1774
      %v1776 = vpop.f32.mrf.mxu0
      %1777 = vmatprep.mubr.f32.mxu0 0.0
      %1778 = vmatmul.mubr.f32.gmra.mxu0 %v1664
      %v1779 = vpop.f32.mrf.mxu0
      %v1780 = vadd.f32 %v1659, %v1779
      %v1781 = vpop.f32.mrf.mxu0
      %1782 = vmatprep.mubr.f32.mxu0 0.0
      %1783 = vmatmul.mubr.f32.gmra.mxu0 %v1667
      %v1784 = vpop.f32.mrf.mxu0
      %v1785 = vadd.f32 %v1659, %v1784
      %v1786 = vpop.f32.mrf.mxu0
      %1787 = vmatprep.mubr.f32.mxu0 0.0
      %1788 = vmatmul.mubr.f32.gmra.mxu0 %v1670
      %v1789 = vpop.f32.mrf.mxu0
      %v1790 = vadd.f32 %v1659, %v1789
      %v1791 = vpop.f32.mrf.mxu0
      %1792 = vmatprep.mubr.f32.mxu0 0.0
      %1793 = vmatmul.mubr.f32.gmra.mxu0 %v1673
      %v1794 = vpop.f32.mrf.mxu0
      %v1795 = vadd.f32 %v1659, %v1794
      %v1796 = vpop.f32.mrf.mxu0
      %1797 = vmatprep.mubr.f32.mxu0 0.0
      %1798 = vmatmul.mubr.f32.gmra.mxu0 %v1676
      %v1799 = vpop.f32.mrf.mxu0
      %v1800 = vadd.f32 %v1659, %v1799
      %v1801 = vpop.f32.mrf.mxu0
      %1802 = vmatprep.mubr.f32.mxu0 0.0
      %1803 = vmatmul.mubr.f32.gmra.mxu0 %v1679
      %v1804 = vpop.f32.mrf.mxu0
      %v1805 = vadd.f32 %v1659, %v1804
      %v1806 = vpop.f32.mrf.mxu0
      %1807 = vmatprep.mubr.f32.mxu0 0.0
      %1808 = vmatmul.mubr.f32.gmra.mxu0 %v1682
      %v1809 = vpop.f32.mrf.mxu0
      %v1810 = vadd.f32 %v1659, %v1809
      %v1811 = vpop.f32.mrf.mxu0
      %1812 = vmatprep.mubr.f32.mxu0 0.0
      %1813 = vmatmul.mubr.f32.gmra.mxu0 %v1685
      %v1814 = vpop.f32.mrf.mxu0
      %v1815 = vadd.f32 %v1659, %v1814
      %v1816 = vpop.f32.mrf.mxu0
      %1817 = vmatprep.mubr.f32.mxu0 0.0
      %1818 = vmatmul.mubr.f32.gmra.mxu0 %v1688
      %v1819 = vpop.f32.mrf.mxu0
      %v1820 = vadd.f32 %v1659, %v1819
      %v1821 = vpop.f32.mrf.mxu0
      %1822 = vmatprep.mubr.f32.mxu0 0.0
      %1823 = vmatmul.mubr.f32.gmra.mxu0 %v1691
      %v1824 = vpop.f32.mrf.mxu0
      %v1825 = vadd.f32 %v1659, %v1824
      %v1826 = vpop.f32.mrf.mxu0
      %1827 = vmatprep.mubr.f32.mxu0 0.0
      %1828 = vmatmul.mubr.f32.gmra.mxu0 %v1694
      %v1829 = vpop.f32.mrf.mxu0
      %v1830 = vadd.f32 %v1659, %v1829
      %v1831 = vpop.f32.mrf.mxu0
      %1832 = vmatprep.mubr.f32.mxu0 0.0
      %1833 = vmatmul.mubr.f32.gmra.mxu0 %v1697
      %v1834 = vpop.f32.mrf.mxu0
      %v1835 = vadd.f32 %v1659, %v1834
      %v1836 = vpop.f32.mrf.mxu0
      %1837 = vmatprep.mubr.f32.mxu0 0.0
      %1838 = vmatmul.mubr.f32.gmra.mxu0 %v1700
      %v1839 = vpop.f32.mrf.mxu0
      %v1840 = vadd.f32 %v1659, %v1839
      %v1841 = vpop.f32.mrf.mxu0
      %1842 = vmatprep.mubr.f32.mxu0 0.0
      %1843 = vmatmul.mubr.f32.gmra.mxu0 %v1703
      %v1844 = vpop.f32.mrf.mxu0
      %v1845 = vadd.f32 %v1659, %v1844
      %v1846 = vpop.f32.mrf.mxu0
      %1847 = vmatprep.mubr.f32.mxu0 0.0
      %1848 = vmatmul.mubr.f32.gmra.mxu0 %v1706
      %v1849 = vpop.f32.mrf.mxu0
      %v1850 = vadd.f32 %v1659, %v1849
      %v1851 = vpop.f32.mrf.mxu0
      %1852 = vdwg.mxu0
      %v1853 = vmax.f32 %v1775, 0.0
      %v1854 = vmax.f32 %v1780, 0.0
      %v1855 = vmax.f32 %v1785, 0.0
      %v1856 = vmax.f32 %v1790, 0.0
      %v1857 = vmax.f32 %v1795, 0.0
      %v1858 = vmax.f32 %v1800, 0.0
      %v1859 = vmax.f32 %v1805, 0.0
      %v1860 = vmax.f32 %v1810, 0.0
      %v1861 = vmax.f32 %v1815, 0.0
      %v1862 = vmax.f32 %v1820, 0.0
      %v1863 = vmax.f32 %v1825, 0.0
      %v1864 = vmax.f32 %v1830, 0.0
      %v1865 = vmax.f32 %v1835, 0.0
      %v1866 = vmax.f32 %v1840, 0.0
      %v1867 = vmax.f32 %v1845, 0.0
      %v1868 = vmax.f32 %v1850, 0.0
      %s1869 = scalar_lea.vmem %s3, 64
      %v1870 = vld [vmem:[%s1869] sm:$0xff]
      %v1871 = vld [vmem:[%s1869 + $0x8] sm:$0xff]
      %v1872 = vld [vmem:[%s1869 + $0x10] sm:$0xff]
      %v1873 = vld [vmem:[%s1869 + $0x18] sm:$0xff]
      %v1874 = vld [vmem:[%s4 + $0x2] sm:$0x1]
      %v1875 = vlaneseq
      %v1876 = vshrl.u32 %v1875, 7
      %v1877 = vsub.s32 0, %v1876
      %v1878 = vrot.slane %v1874, %v1877
      %v1880 = vsel %vm557, %v1853, 0
      %v1883 = vsel %vm557, %v1854, 0
      %v1886 = vsel %vm557, %v1855, 0
      %v1889 = vsel %vm557, %v1856, 0
      %v1892 = vsel %vm557, %v1857, 0
      %v1895 = vsel %vm557, %v1858, 0
      %v1898 = vsel %vm557, %v1859, 0
      %v1901 = vsel %vm557, %v1860, 0
      %v1904 = vsel %vm557, %v1861, 0
      %v1907 = vsel %vm557, %v1862, 0
      %v1910 = vsel %vm557, %v1863, 0
      %v1913 = vsel %vm557, %v1864, 0
      %v1916 = vsel %vm557, %v1865, 0
      %v1919 = vsel %vm557, %v1866, 0
      %v1922 = vsel %vm557, %v1867, 0
      %v1925 = vsel %vm557, %v1868, 0
      %1927 = vmatprep.subr.mxu0 0.0
      %1928 = vmatpush1.msra.mxu0 0.0
      %1929 = vmatprep.subr.mxu0 0.0
      %1930 = vmatpush1.msra.mxu0 0.0
      %1931 = vmatprep.subr.mxu0 0.0
      %1932 = vmatpush1.msra.mxu0 0.0
      %1933 = vmatprep.subr.mxu0 0.0
      %1934 = vmatpush1.msra.mxu0 0.0
      %1935 = vmatprep.subr.mxu0 0.0
      %1936 = vmatpush1.msra.mxu0 0.0
      %1937 = vmatprep.subr.mxu0 0.0
      %1938 = vmatpush1.msra.mxu0 0.0
      %1939 = vmatprep.subr.mxu0 0.0
      %1940 = vmatpush1.msra.mxu0 0.0
      %1941 = vmatprep.subr.mxu0 0.0
      %1942 = vmatpush1.msra.mxu0 0.0
      %1943 = vmatprep.subr.mxu0 0.0
      %1944 = vmatpush1.msra.mxu0 0.0
      %1945 = vmatprep.subr.mxu0 0.0
      %1946 = vmatpush1.msra.mxu0 0.0
      %1947 = vmatprep.subr.mxu0 0.0
      %1948 = vmatpush1.msra.mxu0 0.0
      %1949 = vmatprep.subr.mxu0 0.0
      %1950 = vmatpush1.msra.mxu0 0.0
      %1951 = vmatprep.subr.mxu0 0.0
      %1952 = vmatpush1.msra.mxu0 %v1873
      %1953 = vmatprep.subr.mxu0 0.0
      %1954 = vmatpush1.msra.mxu0 %v1872
      %1955 = vmatprep.subr.mxu0 0.0
      %1956 = vmatpush1.msra.mxu0 %v1871
      %1957 = vmatprep.subr.mxu0 0.0
      %1958 = vmatpush1.msra.mxu0 %v1870
      %1959 = vmatprep.subr.mxu0 0.0
      %1960 = vmatpush2.msra.mxu0 0.0
      %1961 = vmatprep.subr.mxu0 0.0
      %1962 = vmatpush2.msra.mxu0 0.0
      %1963 = vmatprep.subr.mxu0 0.0
      %1964 = vmatpush2.msra.mxu0 0.0
      %1965 = vmatprep.subr.mxu0 0.0
      %1966 = vmatpush2.msra.mxu0 0.0
      %1967 = vmatprep.subr.mxu0 0.0
      %1968 = vmatpush2.msra.mxu0 0.0
      %1969 = vmatprep.subr.mxu0 0.0
      %1970 = vmatpush2.msra.mxu0 0.0
      %1971 = vmatprep.subr.mxu0 0.0
      %1972 = vmatpush2.msra.mxu0 0.0
      %1973 = vmatprep.subr.mxu0 0.0
      %1974 = vmatpush2.msra.mxu0 0.0
      %1975 = vmatprep.subr.mxu0 0.0
      %1976 = vmatpush2.msra.mxu0 0.0
      %1977 = vmatprep.subr.mxu0 0.0
      %1978 = vmatpush2.msra.mxu0 0.0
      %1979 = vmatprep.subr.mxu0 0.0
      %1980 = vmatpush2.msra.mxu0 0.0
      %1981 = vmatprep.subr.mxu0 0.0
      %1982 = vmatpush2.msra.mxu0 0.0
      %1983 = vmatprep.subr.mxu0 0.0
      %1984 = vmatpush2.msra.mxu0 0.0
      %1985 = vmatprep.subr.mxu0 0.0
      %1986 = vmatpush2.msra.mxu0 0.0
      %1987 = vmatprep.subr.mxu0 0.0
      %1988 = vmatpush2.msra.mxu0 0.0
      %1989 = vmatprep.subr.mxu0 0.0
      %1990 = vmatpush2.msra.mxu0 0.0
      %1991 = vmatprep.mubr.f32.mxu0 0.0
      %1992 = vmatmul.mubr.f32.gmra.mxu0 %v1880
      %v1993 = vpop.f32.mrf.mxu0
      %v1994 = vadd.f32 %v1878, %v1993
      %v1995 = vpop.f32.mrf.mxu0
      %1996 = vmatprep.mubr.f32.mxu0 0.0
      %1997 = vmatmul.mubr.f32.gmra.mxu0 %v1883
      %v1998 = vpop.f32.mrf.mxu0
      %v1999 = vadd.f32 %v1878, %v1998
      %v2000 = vpop.f32.mrf.mxu0
      %2001 = vmatprep.mubr.f32.mxu0 0.0
      %2002 = vmatmul.mubr.f32.gmra.mxu0 %v1886
      %v2003 = vpop.f32.mrf.mxu0
      %v2004 = vadd.f32 %v1878, %v2003
      %v2005 = vpop.f32.mrf.mxu0
      %2006 = vmatprep.mubr.f32.mxu0 0.0
      %2007 = vmatmul.mubr.f32.gmra.mxu0 %v1889
      %v2008 = vpop.f32.mrf.mxu0
      %v2009 = vadd.f32 %v1878, %v2008
      %v2010 = vpop.f32.mrf.mxu0
      %2011 = vmatprep.mubr.f32.mxu0 0.0
      %2012 = vmatmul.mubr.f32.gmra.mxu0 %v1892
      %v2013 = vpop.f32.mrf.mxu0
      %v2014 = vadd.f32 %v1878, %v2013
      %v2015 = vpop.f32.mrf.mxu0
      %2016 = vmatprep.mubr.f32.mxu0 0.0
      %2017 = vmatmul.mubr.f32.gmra.mxu0 %v1895
      %v2018 = vpop.f32.mrf.mxu0
      %v2019 = vadd.f32 %v1878, %v2018
      %v2020 = vpop.f32.mrf.mxu0
      %2021 = vmatprep.mubr.f32.mxu0 0.0
      %2022 = vmatmul.mubr.f32.gmra.mxu0 %v1898
      %v2023 = vpop.f32.mrf.mxu0
      %v2024 = vadd.f32 %v1878, %v2023
      %v2025 = vpop.f32.mrf.mxu0
      %2026 = vmatprep.mubr.f32.mxu0 0.0
      %2027 = vmatmul.mubr.f32.gmra.mxu0 %v1901
      %v2028 = vpop.f32.mrf.mxu0
      %v2029 = vadd.f32 %v1878, %v2028
      %v2030 = vpop.f32.mrf.mxu0
      %2031 = vmatprep.mubr.f32.mxu0 0.0
      %2032 = vmatmul.mubr.f32.gmra.mxu0 %v1904
      %v2033 = vpop.f32.mrf.mxu0
      %v2034 = vadd.f32 %v1878, %v2033
      %v2035 = vpop.f32.mrf.mxu0
      %2036 = vmatprep.mubr.f32.mxu0 0.0
      %2037 = vmatmul.mubr.f32.gmra.mxu0 %v1907
      %v2038 = vpop.f32.mrf.mxu0
      %v2039 = vadd.f32 %v1878, %v2038
      %v2040 = vpop.f32.mrf.mxu0
      %2041 = vmatprep.mubr.f32.mxu0 0.0
      %2042 = vmatmul.mubr.f32.gmra.mxu0 %v1910
      %v2043 = vpop.f32.mrf.mxu0
      %v2044 = vadd.f32 %v1878, %v2043
      %v2045 = vpop.f32.mrf.mxu0
      %2046 = vmatprep.mubr.f32.mxu0 0.0
      %2047 = vmatmul.mubr.f32.gmra.mxu0 %v1913
      %v2048 = vpop.f32.mrf.mxu0
      %v2049 = vadd.f32 %v1878, %v2048
      %v2050 = vpop.f32.mrf.mxu0
      %2051 = vmatprep.mubr.f32.mxu0 0.0
      %2052 = vmatmul.mubr.f32.gmra.mxu0 %v1916
      %v2053 = vpop.f32.mrf.mxu0
      %v2054 = vadd.f32 %v1878, %v2053
      %v2055 = vpop.f32.mrf.mxu0
      %2056 = vmatprep.mubr.f32.mxu0 0.0
      %2057 = vmatmul.mubr.f32.gmra.mxu0 %v1919
      %v2058 = vpop.f32.mrf.mxu0
      %v2059 = vadd.f32 %v1878, %v2058
      %v2060 = vpop.f32.mrf.mxu0
      %2061 = vmatprep.mubr.f32.mxu0 0.0
      %2062 = vmatmul.mubr.f32.gmra.mxu0 %v1922
      %v2063 = vpop.f32.mrf.mxu0
      %v2064 = vadd.f32 %v1878, %v2063
      %v2065 = vpop.f32.mrf.mxu0
      %2066 = vmatprep.mubr.f32.mxu0 0.0
      %2067 = vmatmul.mubr.f32.gmra.mxu0 %v1925
      %v2068 = vpop.f32.mrf.mxu0
      %v2069 = vadd.f32 %v1878, %v2068
      %v2070 = vpop.f32.mrf.mxu0
      %2071 = vdwg.mxu0
      %v2072 = vmax.f32 %v1994, 0.0
      %v2073 = vmax.f32 %v1999, 0.0
      %v2074 = vmax.f32 %v2004, 0.0
      %v2075 = vmax.f32 %v2009, 0.0
      %v2076 = vmax.f32 %v2014, 0.0
      %v2077 = vmax.f32 %v2019, 0.0
      %v2078 = vmax.f32 %v2024, 0.0
      %v2079 = vmax.f32 %v2029, 0.0
      %v2080 = vmax.f32 %v2034, 0.0
      %v2081 = vmax.f32 %v2039, 0.0
      %v2082 = vmax.f32 %v2044, 0.0
      %v2083 = vmax.f32 %v2049, 0.0
      %v2084 = vmax.f32 %v2054, 0.0
      %v2085 = vmax.f32 %v2059, 0.0
      %v2086 = vmax.f32 %v2064, 0.0
      %v2087 = vmax.f32 %v2069, 0.0
      %s2088 = scalar_lea.vmem %s5, 64
      %v2089 = vld [vmem:[%s2088] sm:$0xff]
      %v2090 = vld [vmem:[%s2088 + $0x8] sm:$0xff]
      %v2091 = vld [vmem:[%s2088 + $0x10] sm:$0xff]
      %v2092 = vld [vmem:[%s2088 + $0x18] sm:$0xff]
      %v2093 = vld [vmem:[%s6 + $0x2] sm:$0x1]
      %v2094 = vlaneseq
      %v2095 = vshrl.u32 %v2094, 7
      %v2096 = vsub.s32 0, %v2095
      %v2097 = vrot.slane %v2093, %v2096
      %v2099 = vsel %vm557, %v2072, 0
      %v2102 = vsel %vm557, %v2073, 0
      %v2105 = vsel %vm557, %v2074, 0
      %v2108 = vsel %vm557, %v2075, 0
      %v2111 = vsel %vm557, %v2076, 0
      %v2114 = vsel %vm557, %v2077, 0
      %v2117 = vsel %vm557, %v2078, 0
      %v2120 = vsel %vm557, %v2079, 0
      %v2123 = vsel %vm557, %v2080, 0
      %v2126 = vsel %vm557, %v2081, 0
      %v2129 = vsel %vm557, %v2082, 0
      %v2132 = vsel %vm557, %v2083, 0
      %v2135 = vsel %vm557, %v2084, 0
      %v2138 = vsel %vm557, %v2085, 0
      %v2141 = vsel %vm557, %v2086, 0
      %v2144 = vsel %vm557, %v2087, 0
      %2146 = vmatprep.subr.mxu0 0.0
      %2147 = vmatpush1.msra.mxu0 0.0
      %2148 = vmatprep.subr.mxu0 0.0
      %2149 = vmatpush1.msra.mxu0 0.0
      %2150 = vmatprep.subr.mxu0 0.0
      %2151 = vmatpush1.msra.mxu0 0.0
      %2152 = vmatprep.subr.mxu0 0.0
      %2153 = vmatpush1.msra.mxu0 0.0
      %2154 = vmatprep.subr.mxu0 0.0
      %2155 = vmatpush1.msra.mxu0 0.0
      %2156 = vmatprep.subr.mxu0 0.0
      %2157 = vmatpush1.msra.mxu0 0.0
      %2158 = vmatprep.subr.mxu0 0.0
      %2159 = vmatpush1.msra.mxu0 0.0
      %2160 = vmatprep.subr.mxu0 0.0
      %2161 = vmatpush1.msra.mxu0 0.0
      %2162 = vmatprep.subr.mxu0 0.0
      %2163 = vmatpush1.msra.mxu0 0.0
      %2164 = vmatprep.subr.mxu0 0.0
      %2165 = vmatpush1.msra.mxu0 0.0
      %2166 = vmatprep.subr.mxu0 0.0
      %2167 = vmatpush1.msra.mxu0 0.0
      %2168 = vmatprep.subr.mxu0 0.0
      %2169 = vmatpush1.msra.mxu0 0.0
      %2170 = vmatprep.subr.mxu0 0.0
      %2171 = vmatpush1.msra.mxu0 %v2092
      %2172 = vmatprep.subr.mxu0 0.0
      %2173 = vmatpush1.msra.mxu0 %v2091
      %2174 = vmatprep.subr.mxu0 0.0
      %2175 = vmatpush1.msra.mxu0 %v2090
      %2176 = vmatprep.subr.mxu0 0.0
      %2177 = vmatpush1.msra.mxu0 %v2089
      %2178 = vmatprep.subr.mxu0 0.0
      %2179 = vmatpush2.msra.mxu0 0.0
      %2180 = vmatprep.subr.mxu0 0.0
      %2181 = vmatpush2.msra.mxu0 0.0
      %2182 = vmatprep.subr.mxu0 0.0
      %2183 = vmatpush2.msra.mxu0 0.0
      %2184 = vmatprep.subr.mxu0 0.0
      %2185 = vmatpush2.msra.mxu0 0.0
      %2186 = vmatprep.subr.mxu0 0.0
      %2187 = vmatpush2.msra.mxu0 0.0
      %2188 = vmatprep.subr.mxu0 0.0
      %2189 = vmatpush2.msra.mxu0 0.0
      %2190 = vmatprep.subr.mxu0 0.0
      %2191 = vmatpush2.msra.mxu0 0.0
      %2192 = vmatprep.subr.mxu0 0.0
      %2193 = vmatpush2.msra.mxu0 0.0
      %2194 = vmatprep.subr.mxu0 0.0
      %2195 = vmatpush2.msra.mxu0 0.0
      %2196 = vmatprep.subr.mxu0 0.0
      %2197 = vmatpush2.msra.mxu0 0.0
      %2198 = vmatprep.subr.mxu0 0.0
      %2199 = vmatpush2.msra.mxu0 0.0
      %2200 = vmatprep.subr.mxu0 0.0
      %2201 = vmatpush2.msra.mxu0 0.0
      %2202 = vmatprep.subr.mxu0 0.0
      %2203 = vmatpush2.msra.mxu0 0.0
      %2204 = vmatprep.subr.mxu0 0.0
      %2205 = vmatpush2.msra.mxu0 0.0
      %2206 = vmatprep.subr.mxu0 0.0
      %2207 = vmatpush2.msra.mxu0 0.0
      %2208 = vmatprep.subr.mxu0 0.0
      %2209 = vmatpush2.msra.mxu0 0.0
      %2210 = vmatprep.mubr.f32.mxu0 0.0
      %2211 = vmatmul.mubr.f32.gmra.mxu0 %v2099
      %v2212 = vpop.f32.mrf.mxu0
      %v2213 = vadd.f32 %v2097, %v2212
      %v2214 = vpop.f32.mrf.mxu0
      %2215 = vmatprep.mubr.f32.mxu0 0.0
      %2216 = vmatmul.mubr.f32.gmra.mxu0 %v2102
      %v2217 = vpop.f32.mrf.mxu0
      %v2218 = vadd.f32 %v2097, %v2217
      %v2219 = vpop.f32.mrf.mxu0
      %2220 = vmatprep.mubr.f32.mxu0 0.0
      %2221 = vmatmul.mubr.f32.gmra.mxu0 %v2105
      %v2222 = vpop.f32.mrf.mxu0
      %v2223 = vadd.f32 %v2097, %v2222
      %v2224 = vpop.f32.mrf.mxu0
      %2225 = vmatprep.mubr.f32.mxu0 0.0
      %2226 = vmatmul.mubr.f32.gmra.mxu0 %v2108
      %v2227 = vpop.f32.mrf.mxu0
      %v2228 = vadd.f32 %v2097, %v2227
      %v2229 = vpop.f32.mrf.mxu0
      %2230 = vmatprep.mubr.f32.mxu0 0.0
      %2231 = vmatmul.mubr.f32.gmra.mxu0 %v2111
      %v2232 = vpop.f32.mrf.mxu0
      %v2233 = vadd.f32 %v2097, %v2232
      %v2234 = vpop.f32.mrf.mxu0
      %2235 = vmatprep.mubr.f32.mxu0 0.0
      %2236 = vmatmul.mubr.f32.gmra.mxu0 %v2114
      %v2237 = vpop.f32.mrf.mxu0
      %v2238 = vadd.f32 %v2097, %v2237
      %v2239 = vpop.f32.mrf.mxu0
      %2240 = vmatprep.mubr.f32.mxu0 0.0
      %2241 = vmatmul.mubr.f32.gmra.mxu0 %v2117
      %v2242 = vpop.f32.mrf.mxu0
      %v2243 = vadd.f32 %v2097, %v2242
      %v2244 = vpop.f32.mrf.mxu0
      %2245 = vmatprep.mubr.f32.mxu0 0.0
      %2246 = vmatmul.mubr.f32.gmra.mxu0 %v2120
      %v2247 = vpop.f32.mrf.mxu0
      %v2248 = vadd.f32 %v2097, %v2247
      %v2249 = vpop.f32.mrf.mxu0
      %2250 = vmatprep.mubr.f32.mxu0 0.0
      %2251 = vmatmul.mubr.f32.gmra.mxu0 %v2123
      %v2252 = vpop.f32.mrf.mxu0
      %v2253 = vadd.f32 %v2097, %v2252
      %v2254 = vpop.f32.mrf.mxu0
      %2255 = vmatprep.mubr.f32.mxu0 0.0
      %2256 = vmatmul.mubr.f32.gmra.mxu0 %v2126
      %v2257 = vpop.f32.mrf.mxu0
      %v2258 = vadd.f32 %v2097, %v2257
      %v2259 = vpop.f32.mrf.mxu0
      %2260 = vmatprep.mubr.f32.mxu0 0.0
      %2261 = vmatmul.mubr.f32.gmra.mxu0 %v2129
      %v2262 = vpop.f32.mrf.mxu0
      %v2263 = vadd.f32 %v2097, %v2262
      %v2264 = vpop.f32.mrf.mxu0
      %2265 = vmatprep.mubr.f32.mxu0 0.0
      %2266 = vmatmul.mubr.f32.gmra.mxu0 %v2132
      %v2267 = vpop.f32.mrf.mxu0
      %v2268 = vadd.f32 %v2097, %v2267
      %v2269 = vpop.f32.mrf.mxu0
      %2270 = vmatprep.mubr.f32.mxu0 0.0
      %2271 = vmatmul.mubr.f32.gmra.mxu0 %v2135
      %v2272 = vpop.f32.mrf.mxu0
      %v2273 = vadd.f32 %v2097, %v2272
      %v2274 = vpop.f32.mrf.mxu0
      %2275 = vmatprep.mubr.f32.mxu0 0.0
      %2276 = vmatmul.mubr.f32.gmra.mxu0 %v2138
      %v2277 = vpop.f32.mrf.mxu0
      %v2278 = vadd.f32 %v2097, %v2277
      %v2279 = vpop.f32.mrf.mxu0
      %2280 = vmatprep.mubr.f32.mxu0 0.0
      %2281 = vmatmul.mubr.f32.gmra.mxu0 %v2141
      %v2282 = vpop.f32.mrf.mxu0
      %v2283 = vadd.f32 %v2097, %v2282
      %v2284 = vpop.f32.mrf.mxu0
      %2285 = vmatprep.mubr.f32.mxu0 0.0
      %2286 = vmatmul.mubr.f32.gmra.mxu0 %v2144
      %v2287 = vpop.f32.mrf.mxu0
      %v2288 = vadd.f32 %v2097, %v2287
      %v2289 = vpop.f32.mrf.mxu0
      %2290 = vdwg.mxu0
      %v2291 = vadd.f32 %v1630, %v2213
      %v2292 = vadd.f32 %v1631, %v2218
      %v2293 = vadd.f32 %v1632, %v2223
      %v2294 = vadd.f32 %v1633, %v2228
      %v2295 = vadd.f32 %v1634, %v2233
      %v2296 = vadd.f32 %v1635, %v2238
      %v2297 = vadd.f32 %v1636, %v2243
      %v2298 = vadd.f32 %v1637, %v2248
      %v2299 = vadd.f32 %v1638, %v2253
      %v2300 = vadd.f32 %v1639, %v2258
      %v2301 = vadd.f32 %v1640, %v2263
      %v2302 = vadd.f32 %v1641, %v2268
      %v2303 = vadd.f32 %v1642, %v2273
      %v2304 = vadd.f32 %v1643, %v2278
      %v2305 = vadd.f32 %v1644, %v2283
      %v2306 = vadd.f32 %v1645, %v2288
      %s2307 = scalar_lea.vmem %s1, 192
      %v2308 = vld [vmem:[%s2307] sm:$0xff]
      %v2309 = vld [vmem:[%s2307 + $0x8] sm:$0xff]
      %v2310 = vld [vmem:[%s2307 + $0x10] sm:$0xff]
      %v2311 = vld [vmem:[%s2307 + $0x18] sm:$0xff]
      %v2312 = vld [vmem:[%s2307 + $0x20] sm:$0xff]
      %v2313 = vld [vmem:[%s2307 + $0x28] sm:$0xff]
      %v2314 = vld [vmem:[%s2307 + $0x30] sm:$0xff]
      %v2315 = vld [vmem:[%s2307 + $0x38] sm:$0xff]
      %v2316 = vld [vmem:[%s2 + $0x3] sm:$0x1]
      %v2317 = vlaneseq
      %v2318 = vshrl.u32 %v2317, 7
      %v2319 = vsub.s32 0, %v2318
      %v2320 = vrot.slane %v2316, %v2319
      %v2322 = vsel %vm338, %v2291, 0
      %v2325 = vsel %vm338, %v2292, 0
      %v2328 = vsel %vm338, %v2293, 0
      %v2331 = vsel %vm338, %v2294, 0
      %v2334 = vsel %vm338, %v2295, 0
      %v2337 = vsel %vm338, %v2296, 0
      %v2340 = vsel %vm338, %v2297, 0
      %v2343 = vsel %vm338, %v2298, 0
      %v2346 = vsel %vm338, %v2299, 0
      %v2349 = vsel %vm338, %v2300, 0
      %v2352 = vsel %vm338, %v2301, 0
      %v2355 = vsel %vm338, %v2302, 0
      %v2358 = vsel %vm338, %v2303, 0
      %v2361 = vsel %vm338, %v2304, 0
      %v2364 = vsel %vm338, %v2305, 0
      %v2367 = vsel %vm338, %v2306, 0
      %2369 = vmatprep.subr.mxu0 0.0
      %2370 = vmatpush1.msra.mxu0 0.0
      %2371 = vmatprep.subr.mxu0 0.0
      %2372 = vmatpush1.msra.mxu0 0.0
      %2373 = vmatprep.subr.mxu0 0.0
      %2374 = vmatpush1.msra.mxu0 0.0
      %2375 = vmatprep.subr.mxu0 0.0
      %2376 = vmatpush1.msra.mxu0 0.0
      %2377 = vmatprep.subr.mxu0 0.0
      %2378 = vmatpush1.msra.mxu0 0.0
      %2379 = vmatprep.subr.mxu0 0.0
      %2380 = vmatpush1.msra.mxu0 0.0
      %2381 = vmatprep.subr.mxu0 0.0
      %2382 = vmatpush1.msra.mxu0 0.0
      %2383 = vmatprep.subr.mxu0 0.0
      %2384 = vmatpush1.msra.mxu0 0.0
      %2385 = vmatprep.subr.mxu0 0.0
      %2386 = vmatpush1.msra.mxu0 %v2315
      %2387 = vmatprep.subr.mxu0 0.0
      %2388 = vmatpush1.msra.mxu0 %v2314
      %2389 = vmatprep.subr.mxu0 0.0
      %2390 = vmatpush1.msra.mxu0 %v2313
      %2391 = vmatprep.subr.mxu0 0.0
      %2392 = vmatpush1.msra.mxu0 %v2312
      %2393 = vmatprep.subr.mxu0 0.0
      %2394 = vmatpush1.msra.mxu0 %v2311
      %2395 = vmatprep.subr.mxu0 0.0
      %2396 = vmatpush1.msra.mxu0 %v2310
      %2397 = vmatprep.subr.mxu0 0.0
      %2398 = vmatpush1.msra.mxu0 %v2309
      %2399 = vmatprep.subr.mxu0 0.0
      %2400 = vmatpush1.msra.mxu0 %v2308
      %2401 = vmatprep.subr.mxu0 0.0
      %2402 = vmatpush2.msra.mxu0 0.0
      %2403 = vmatprep.subr.mxu0 0.0
      %2404 = vmatpush2.msra.mxu0 0.0
      %2405 = vmatprep.subr.mxu0 0.0
      %2406 = vmatpush2.msra.mxu0 0.0
      %2407 = vmatprep.subr.mxu0 0.0
      %2408 = vmatpush2.msra.mxu0 0.0
      %2409 = vmatprep.subr.mxu0 0.0
      %2410 = vmatpush2.msra.mxu0 0.0
      %2411 = vmatprep.subr.mxu0 0.0
      %2412 = vmatpush2.msra.mxu0 0.0
      %2413 = vmatprep.subr.mxu0 0.0
      %2414 = vmatpush2.msra.mxu0 0.0
      %2415 = vmatprep.subr.mxu0 0.0
      %2416 = vmatpush2.msra.mxu0 0.0
      %2417 = vmatprep.subr.mxu0 0.0
      %2418 = vmatpush2.msra.mxu0 0.0
      %2419 = vmatprep.subr.mxu0 0.0
      %2420 = vmatpush2.msra.mxu0 0.0
      %2421 = vmatprep.subr.mxu0 0.0
      %2422 = vmatpush2.msra.mxu0 0.0
      %2423 = vmatprep.subr.mxu0 0.0
      %2424 = vmatpush2.msra.mxu0 0.0
      %2425 = vmatprep.subr.mxu0 0.0
      %2426 = vmatpush2.msra.mxu0 0.0
      %2427 = vmatprep.subr.mxu0 0.0
      %2428 = vmatpush2.msra.mxu0 0.0
      %2429 = vmatprep.subr.mxu0 0.0
      %2430 = vmatpush2.msra.mxu0 0.0
      %2431 = vmatprep.subr.mxu0 0.0
      %2432 = vmatpush2.msra.mxu0 0.0
      %2433 = vmatprep.mubr.f32.mxu0 0.0
      %2434 = vmatmul.mubr.f32.gmra.mxu0 %v2322
      %v2435 = vpop.f32.mrf.mxu0
      %v2436 = vadd.f32 %v2320, %v2435
      %v2437 = vpop.f32.mrf.mxu0
      %2438 = vmatprep.mubr.f32.mxu0 0.0
      %2439 = vmatmul.mubr.f32.gmra.mxu0 %v2325
      %v2440 = vpop.f32.mrf.mxu0
      %v2441 = vadd.f32 %v2320, %v2440
      %v2442 = vpop.f32.mrf.mxu0
      %2443 = vmatprep.mubr.f32.mxu0 0.0
      %2444 = vmatmul.mubr.f32.gmra.mxu0 %v2328
      %v2445 = vpop.f32.mrf.mxu0
      %v2446 = vadd.f32 %v2320, %v2445
      %v2447 = vpop.f32.mrf.mxu0
      %2448 = vmatprep.mubr.f32.mxu0 0.0
      %2449 = vmatmul.mubr.f32.gmra.mxu0 %v2331
      %v2450 = vpop.f32.mrf.mxu0
      %v2451 = vadd.f32 %v2320, %v2450
      %v2452 = vpop.f32.mrf.mxu0
      %2453 = vmatprep.mubr.f32.mxu0 0.0
      %2454 = vmatmul.mubr.f32.gmra.mxu0 %v2334
      %v2455 = vpop.f32.mrf.mxu0
      %v2456 = vadd.f32 %v2320, %v2455
      %v2457 = vpop.f32.mrf.mxu0
      %2458 = vmatprep.mubr.f32.mxu0 0.0
      %2459 = vmatmul.mubr.f32.gmra.mxu0 %v2337
      %v2460 = vpop.f32.mrf.mxu0
      %v2461 = vadd.f32 %v2320, %v2460
      %v2462 = vpop.f32.mrf.mxu0
      %2463 = vmatprep.mubr.f32.mxu0 0.0
      %2464 = vmatmul.mubr.f32.gmra.mxu0 %v2340
      %v2465 = vpop.f32.mrf.mxu0
      %v2466 = vadd.f32 %v2320, %v2465
      %v2467 = vpop.f32.mrf.mxu0
      %2468 = vmatprep.mubr.f32.mxu0 0.0
      %2469 = vmatmul.mubr.f32.gmra.mxu0 %v2343
      %v2470 = vpop.f32.mrf.mxu0
      %v2471 = vadd.f32 %v2320, %v2470
      %v2472 = vpop.f32.mrf.mxu0
      %2473 = vmatprep.mubr.f32.mxu0 0.0
      %2474 = vmatmul.mubr.f32.gmra.mxu0 %v2346
      %v2475 = vpop.f32.mrf.mxu0
      %v2476 = vadd.f32 %v2320, %v2475
      %v2477 = vpop.f32.mrf.mxu0
      %2478 = vmatprep.mubr.f32.mxu0 0.0
      %2479 = vmatmul.mubr.f32.gmra.mxu0 %v2349
      %v2480 = vpop.f32.mrf.mxu0
      %v2481 = vadd.f32 %v2320, %v2480
      %v2482 = vpop.f32.mrf.mxu0
      %2483 = vmatprep.mubr.f32.mxu0 0.0
      %2484 = vmatmul.mubr.f32.gmra.mxu0 %v2352
      %v2485 = vpop.f32.mrf.mxu0
      %v2486 = vadd.f32 %v2320, %v2485
      %v2487 = vpop.f32.mrf.mxu0
      %2488 = vmatprep.mubr.f32.mxu0 0.0
      %2489 = vmatmul.mubr.f32.gmra.mxu0 %v2355
      %v2490 = vpop.f32.mrf.mxu0
      %v2491 = vadd.f32 %v2320, %v2490
      %v2492 = vpop.f32.mrf.mxu0
      %2493 = vmatprep.mubr.f32.mxu0 0.0
      %2494 = vmatmul.mubr.f32.gmra.mxu0 %v2358
      %v2495 = vpop.f32.mrf.mxu0
      %v2496 = vadd.f32 %v2320, %v2495
      %v2497 = vpop.f32.mrf.mxu0
      %2498 = vmatprep.mubr.f32.mxu0 0.0
      %2499 = vmatmul.mubr.f32.gmra.mxu0 %v2361
      %v2500 = vpop.f32.mrf.mxu0
      %v2501 = vadd.f32 %v2320, %v2500
      %v2502 = vpop.f32.mrf.mxu0
      %2503 = vmatprep.mubr.f32.mxu0 0.0
      %2504 = vmatmul.mubr.f32.gmra.mxu0 %v2364
      %v2505 = vpop.f32.mrf.mxu0
      %v2506 = vadd.f32 %v2320, %v2505
      %v2507 = vpop.f32.mrf.mxu0
      %2508 = vmatprep.mubr.f32.mxu0 0.0
      %2509 = vmatmul.mubr.f32.gmra.mxu0 %v2367
      %v2510 = vpop.f32.mrf.mxu0
      %v2511 = vadd.f32 %v2320, %v2510
      %v2512 = vpop.f32.mrf.mxu0
      %2513 = vdwg.mxu0
      %v2514 = vmax.f32 %v2436, 0.0
      %v2515 = vmax.f32 %v2441, 0.0
      %v2516 = vmax.f32 %v2446, 0.0
      %v2517 = vmax.f32 %v2451, 0.0
      %v2518 = vmax.f32 %v2456, 0.0
      %v2519 = vmax.f32 %v2461, 0.0
      %v2520 = vmax.f32 %v2466, 0.0
      %v2521 = vmax.f32 %v2471, 0.0
      %v2522 = vmax.f32 %v2476, 0.0
      %v2523 = vmax.f32 %v2481, 0.0
      %v2524 = vmax.f32 %v2486, 0.0
      %v2525 = vmax.f32 %v2491, 0.0
      %v2526 = vmax.f32 %v2496, 0.0
      %v2527 = vmax.f32 %v2501, 0.0
      %v2528 = vmax.f32 %v2506, 0.0
      %v2529 = vmax.f32 %v2511, 0.0
      %s2530 = scalar_lea.vmem %s3, 96
      %v2531 = vld [vmem:[%s2530] sm:$0xff]
      %v2532 = vld [vmem:[%s2530 + $0x8] sm:$0xff]
      %v2533 = vld [vmem:[%s2530 + $0x10] sm:$0xff]
      %v2534 = vld [vmem:[%s2530 + $0x18] sm:$0xff]
      %v2535 = vld [vmem:[%s4 + $0x3] sm:$0x1]
      %v2536 = vlaneseq
      %v2537 = vshrl.u32 %v2536, 7
      %v2538 = vsub.s32 0, %v2537
      %v2539 = vrot.slane %v2535, %v2538
      %v2541 = vsel %vm557, %v2514, 0
      %v2544 = vsel %vm557, %v2515, 0
      %v2547 = vsel %vm557, %v2516, 0
      %v2550 = vsel %vm557, %v2517, 0
      %v2553 = vsel %vm557, %v2518, 0
      %v2556 = vsel %vm557, %v2519, 0
      %v2559 = vsel %vm557, %v2520, 0
      %v2562 = vsel %vm557, %v2521, 0
      %v2565 = vsel %vm557, %v2522, 0
      %v2568 = vsel %vm557, %v2523, 0
      %v2571 = vsel %vm557, %v2524, 0
      %v2574 = vsel %vm557, %v2525, 0
      %v2577 = vsel %vm557, %v2526, 0
      %v2580 = vsel %vm557, %v2527, 0
      %v2583 = vsel %vm557, %v2528, 0
      %v2586 = vsel %vm557, %v2529, 0
      %2588 = vmatprep.subr.mxu0 0.0
      %2589 = vmatpush1.msra.mxu0 0.0
      %2590 = vmatprep.subr.mxu0 0.0
      %2591 = vmatpush1.msra.mxu0 0.0
      %2592 = vmatprep.subr.mxu0 0.0
      %2593 = vmatpush1.msra.mxu0 0.0
      %2594 = vmatprep.subr.mxu0 0.0
      %2595 = vmatpush1.msra.mxu0 0.0
      %2596 = vmatprep.subr.mxu0 0.0
      %2597 = vmatpush1.msra.mxu0 0.0
      %2598 = vmatprep.subr.mxu0 0.0
      %2599 = vmatpush1.msra.mxu0 0.0
      %2600 = vmatprep.subr.mxu0 0.0
      %2601 = vmatpush1.msra.mxu0 0.0
      %2602 = vmatprep.subr.mxu0 0.0
      %2603 = vmatpush1.msra.mxu0 0.0
      %2604 = vmatprep.subr.mxu0 0.0
      %2605 = vmatpush1.msra.mxu0 0.0
      %2606 = vmatprep.subr.mxu0 0.0
      %2607 = vmatpush1.msra.mxu0 0.0
      %2608 = vmatprep.subr.mxu0 0.0
      %2609 = vmatpush1.msra.mxu0 0.0
      %2610 = vmatprep.subr.mxu0 0.0
      %2611 = vmatpush1.msra.mxu0 0.0
      %2612 = vmatprep.subr.mxu0 0.0
      %2613 = vmatpush1.msra.mxu0 %v2534
      %2614 = vmatprep.subr.mxu0 0.0
      %2615 = vmatpush1.msra.mxu0 %v2533
      %2616 = vmatprep.subr.mxu0 0.0
      %2617 = vmatpush1.msra.mxu0 %v2532
      %2618 = vmatprep.subr.mxu0 0.0
      %2619 = vmatpush1.msra.mxu0 %v2531
      %2620 = vmatprep.subr.mxu0 0.0
      %2621 = vmatpush2.msra.mxu0 0.0
      %2622 = vmatprep.subr.mxu0 0.0
      %2623 = vmatpush2.msra.mxu0 0.0
      %2624 = vmatprep.subr.mxu0 0.0
      %2625 = vmatpush2.msra.mxu0 0.0
      %2626 = vmatprep.subr.mxu0 0.0
      %2627 = vmatpush2.msra.mxu0 0.0
      %2628 = vmatprep.subr.mxu0 0.0
      %2629 = vmatpush2.msra.mxu0 0.0
      %2630 = vmatprep.subr.mxu0 0.0
      %2631 = vmatpush2.msra.mxu0 0.0
      %2632 = vmatprep.subr.mxu0 0.0
      %2633 = vmatpush2.msra.mxu0 0.0
      %2634 = vmatprep.subr.mxu0 0.0
      %2635 = vmatpush2.msra.mxu0 0.0
      %2636 = vmatprep.subr.mxu0 0.0
      %2637 = vmatpush2.msra.mxu0 0.0
      %2638 = vmatprep.subr.mxu0 0.0
      %2639 = vmatpush2.msra.mxu0 0.0
      %2640 = vmatprep.subr.mxu0 0.0
      %2641 = vmatpush2.msra.mxu0 0.0
      %2642 = vmatprep.subr.mxu0 0.0
      %2643 = vmatpush2.msra.mxu0 0.0
      %2644 = vmatprep.subr.mxu0 0.0
      %2645 = vmatpush2.msra.mxu0 0.0
      %2646 = vmatprep.subr.mxu0 0.0
      %2647 = vmatpush2.msra.mxu0 0.0
      %2648 = vmatprep.subr.mxu0 0.0
      %2649 = vmatpush2.msra.mxu0 0.0
      %2650 = vmatprep.subr.mxu0 0.0
      %2651 = vmatpush2.msra.mxu0 0.0
      %2652 = vmatprep.mubr.f32.mxu0 0.0
      %2653 = vmatmul.mubr.f32.gmra.mxu0 %v2541
      %v2654 = vpop.f32.mrf.mxu0
      %v2655 = vadd.f32 %v2539, %v2654
      %v2656 = vpop.f32.mrf.mxu0
      %2657 = vmatprep.mubr.f32.mxu0 0.0
      %2658 = vmatmul.mubr.f32.gmra.mxu0 %v2544
      %v2659 = vpop.f32.mrf.mxu0
      %v2660 = vadd.f32 %v2539, %v2659
      %v2661 = vpop.f32.mrf.mxu0
      %2662 = vmatprep.mubr.f32.mxu0 0.0
      %2663 = vmatmul.mubr.f32.gmra.mxu0 %v2547
      %v2664 = vpop.f32.mrf.mxu0
      %v2665 = vadd.f32 %v2539, %v2664
      %v2666 = vpop.f32.mrf.mxu0
      %2667 = vmatprep.mubr.f32.mxu0 0.0
      %2668 = vmatmul.mubr.f32.gmra.mxu0 %v2550
      %v2669 = vpop.f32.mrf.mxu0
      %v2670 = vadd.f32 %v2539, %v2669
      %v2671 = vpop.f32.mrf.mxu0
      %2672 = vmatprep.mubr.f32.mxu0 0.0
      %2673 = vmatmul.mubr.f32.gmra.mxu0 %v2553
      %v2674 = vpop.f32.mrf.mxu0
      %v2675 = vadd.f32 %v2539, %v2674
      %v2676 = vpop.f32.mrf.mxu0
      %2677 = vmatprep.mubr.f32.mxu0 0.0
      %2678 = vmatmul.mubr.f32.gmra.mxu0 %v2556
      %v2679 = vpop.f32.mrf.mxu0
      %v2680 = vadd.f32 %v2539, %v2679
      %v2681 = vpop.f32.mrf.mxu0
      %2682 = vmatprep.mubr.f32.mxu0 0.0
      %2683 = vmatmul.mubr.f32.gmra.mxu0 %v2559
      %v2684 = vpop.f32.mrf.mxu0
      %v2685 = vadd.f32 %v2539, %v2684
      %v2686 = vpop.f32.mrf.mxu0
      %2687 = vmatprep.mubr.f32.mxu0 0.0
      %2688 = vmatmul.mubr.f32.gmra.mxu0 %v2562
      %v2689 = vpop.f32.mrf.mxu0
      %v2690 = vadd.f32 %v2539, %v2689
      %v2691 = vpop.f32.mrf.mxu0
      %2692 = vmatprep.mubr.f32.mxu0 0.0
      %2693 = vmatmul.mubr.f32.gmra.mxu0 %v2565
      %v2694 = vpop.f32.mrf.mxu0
      %v2695 = vadd.f32 %v2539, %v2694
      %v2696 = vpop.f32.mrf.mxu0
      %2697 = vmatprep.mubr.f32.mxu0 0.0
      %2698 = vmatmul.mubr.f32.gmra.mxu0 %v2568
      %v2699 = vpop.f32.mrf.mxu0
      %v2700 = vadd.f32 %v2539, %v2699
      %v2701 = vpop.f32.mrf.mxu0
      %2702 = vmatprep.mubr.f32.mxu0 0.0
      %2703 = vmatmul.mubr.f32.gmra.mxu0 %v2571
      %v2704 = vpop.f32.mrf.mxu0
      %v2705 = vadd.f32 %v2539, %v2704
      %v2706 = vpop.f32.mrf.mxu0
      %2707 = vmatprep.mubr.f32.mxu0 0.0
      %2708 = vmatmul.mubr.f32.gmra.mxu0 %v2574
      %v2709 = vpop.f32.mrf.mxu0
      %v2710 = vadd.f32 %v2539, %v2709
      %v2711 = vpop.f32.mrf.mxu0
      %2712 = vmatprep.mubr.f32.mxu0 0.0
      %2713 = vmatmul.mubr.f32.gmra.mxu0 %v2577
      %v2714 = vpop.f32.mrf.mxu0
      %v2715 = vadd.f32 %v2539, %v2714
      %v2716 = vpop.f32.mrf.mxu0
      %2717 = vmatprep.mubr.f32.mxu0 0.0
      %2718 = vmatmul.mubr.f32.gmra.mxu0 %v2580
      %v2719 = vpop.f32.mrf.mxu0
      %v2720 = vadd.f32 %v2539, %v2719
      %v2721 = vpop.f32.mrf.mxu0
      %2722 = vmatprep.mubr.f32.mxu0 0.0
      %2723 = vmatmul.mubr.f32.gmra.mxu0 %v2583
      %v2724 = vpop.f32.mrf.mxu0
      %v2725 = vadd.f32 %v2539, %v2724
      %v2726 = vpop.f32.mrf.mxu0
      %2727 = vmatprep.mubr.f32.mxu0 0.0
      %2728 = vmatmul.mubr.f32.gmra.mxu0 %v2586
      %v2729 = vpop.f32.mrf.mxu0
      %v2730 = vadd.f32 %v2539, %v2729
      %v2731 = vpop.f32.mrf.mxu0
      %2732 = vdwg.mxu0
      %v2733 = vmax.f32 %v2655, 0.0
      %v2734 = vmax.f32 %v2660, 0.0
      %v2735 = vmax.f32 %v2665, 0.0
      %v2736 = vmax.f32 %v2670, 0.0
      %v2737 = vmax.f32 %v2675, 0.0
      %v2738 = vmax.f32 %v2680, 0.0
      %v2739 = vmax.f32 %v2685, 0.0
      %v2740 = vmax.f32 %v2690, 0.0
      %v2741 = vmax.f32 %v2695, 0.0
      %v2742 = vmax.f32 %v2700, 0.0
      %v2743 = vmax.f32 %v2705, 0.0
      %v2744 = vmax.f32 %v2710, 0.0
      %v2745 = vmax.f32 %v2715, 0.0
      %v2746 = vmax.f32 %v2720, 0.0
      %v2747 = vmax.f32 %v2725, 0.0
      %v2748 = vmax.f32 %v2730, 0.0
      %s2749 = scalar_lea.vmem %s5, 96
      %v2750 = vld [vmem:[%s2749] sm:$0xff]
      %v2751 = vld [vmem:[%s2749 + $0x8] sm:$0xff]
      %v2752 = vld [vmem:[%s2749 + $0x10] sm:$0xff]
      %v2753 = vld [vmem:[%s2749 + $0x18] sm:$0xff]
      %v2754 = vld [vmem:[%s6 + $0x3] sm:$0x1]
      %v2755 = vlaneseq
      %v2756 = vshrl.u32 %v2755, 7
      %v2757 = vsub.s32 0, %v2756
      %v2758 = vrot.slane %v2754, %v2757
      %v2760 = vsel %vm557, %v2733, 0
      %v2763 = vsel %vm557, %v2734, 0
      %v2766 = vsel %vm557, %v2735, 0
      %v2769 = vsel %vm557, %v2736, 0
      %v2772 = vsel %vm557, %v2737, 0
      %v2775 = vsel %vm557, %v2738, 0
      %v2778 = vsel %vm557, %v2739, 0
      %v2781 = vsel %vm557, %v2740, 0
      %v2784 = vsel %vm557, %v2741, 0
      %v2787 = vsel %vm557, %v2742, 0
      %v2790 = vsel %vm557, %v2743, 0
      %v2793 = vsel %vm557, %v2744, 0
      %v2796 = vsel %vm557, %v2745, 0
      %v2799 = vsel %vm557, %v2746, 0
      %v2802 = vsel %vm557, %v2747, 0
      %v2805 = vsel %vm557, %v2748, 0
      %2807 = vmatprep.subr.mxu0 0.0
      %2808 = vmatpush1.msra.mxu0 0.0
      %2809 = vmatprep.subr.mxu0 0.0
      %2810 = vmatpush1.msra.mxu0 0.0
      %2811 = vmatprep.subr.mxu0 0.0
      %2812 = vmatpush1.msra.mxu0 0.0
      %2813 = vmatprep.subr.mxu0 0.0
      %2814 = vmatpush1.msra.mxu0 0.0
      %2815 = vmatprep.subr.mxu0 0.0
      %2816 = vmatpush1.msra.mxu0 0.0
      %2817 = vmatprep.subr.mxu0 0.0
      %2818 = vmatpush1.msra.mxu0 0.0
      %2819 = vmatprep.subr.mxu0 0.0
      %2820 = vmatpush1.msra.mxu0 0.0
      %2821 = vmatprep.subr.mxu0 0.0
      %2822 = vmatpush1.msra.mxu0 0.0
      %2823 = vmatprep.subr.mxu0 0.0
      %2824 = vmatpush1.msra.mxu0 0.0
      %2825 = vmatprep.subr.mxu0 0.0
      %2826 = vmatpush1.msra.mxu0 0.0
      %2827 = vmatprep.subr.mxu0 0.0
      %2828 = vmatpush1.msra.mxu0 0.0
      %2829 = vmatprep.subr.mxu0 0.0
      %2830 = vmatpush1.msra.mxu0 0.0
      %2831 = vmatprep.subr.mxu0 0.0
      %2832 = vmatpush1.msra.mxu0 %v2753
      %2833 = vmatprep.subr.mxu0 0.0
      %2834 = vmatpush1.msra.mxu0 %v2752
      %2835 = vmatprep.subr.mxu0 0.0
      %2836 = vmatpush1.msra.mxu0 %v2751
      %2837 = vmatprep.subr.mxu0 0.0
      %2838 = vmatpush1.msra.mxu0 %v2750
      %2839 = vmatprep.subr.mxu0 0.0
      %2840 = vmatpush2.msra.mxu0 0.0
      %2841 = vmatprep.subr.mxu0 0.0
      %2842 = vmatpush2.msra.mxu0 0.0
      %2843 = vmatprep.subr.mxu0 0.0
      %2844 = vmatpush2.msra.mxu0 0.0
      %2845 = vmatprep.subr.mxu0 0.0
      %2846 = vmatpush2.msra.mxu0 0.0
      %2847 = vmatprep.subr.mxu0 0.0
      %2848 = vmatpush2.msra.mxu0 0.0
      %2849 = vmatprep.subr.mxu0 0.0
      %2850 = vmatpush2.msra.mxu0 0.0
      %2851 = vmatprep.subr.mxu0 0.0
      %2852 = vmatpush2.msra.mxu0 0.0
      %2853 = vmatprep.subr.mxu0 0.0
      %2854 = vmatpush2.msra.mxu0 0.0
      %2855 = vmatprep.subr.mxu0 0.0
      %2856 = vmatpush2.msra.mxu0 0.0
      %2857 = vmatprep.subr.mxu0 0.0
      %2858 = vmatpush2.msra.mxu0 0.0
      %2859 = vmatprep.subr.mxu0 0.0
      %2860 = vmatpush2.msra.mxu0 0.0
      %2861 = vmatprep.subr.mxu0 0.0
      %2862 = vmatpush2.msra.mxu0 0.0
      %2863 = vmatprep.subr.mxu0 0.0
      %2864 = vmatpush2.msra.mxu0 0.0
      %2865 = vmatprep.subr.mxu0 0.0
      %2866 = vmatpush2.msra.mxu0 0.0
      %2867 = vmatprep.subr.mxu0 0.0
      %2868 = vmatpush2.msra.mxu0 0.0
      %2869 = vmatprep.subr.mxu0 0.0
      %2870 = vmatpush2.msra.mxu0 0.0
      %2871 = vmatprep.mubr.f32.mxu0 0.0
      %2872 = vmatmul.mubr.f32.gmra.mxu0 %v2760
      %v2873 = vpop.f32.mrf.mxu0
      %v2874 = vadd.f32 %v2758, %v2873
      %v2875 = vpop.f32.mrf.mxu0
      %2876 = vmatprep.mubr.f32.mxu0 0.0
      %2877 = vmatmul.mubr.f32.gmra.mxu0 %v2763
      %v2878 = vpop.f32.mrf.mxu0
      %v2879 = vadd.f32 %v2758, %v2878
      %v2880 = vpop.f32.mrf.mxu0
      %2881 = vmatprep.mubr.f32.mxu0 0.0
      %2882 = vmatmul.mubr.f32.gmra.mxu0 %v2766
      %v2883 = vpop.f32.mrf.mxu0
      %v2884 = vadd.f32 %v2758, %v2883
      %v2885 = vpop.f32.mrf.mxu0
      %2886 = vmatprep.mubr.f32.mxu0 0.0
      %2887 = vmatmul.mubr.f32.gmra.mxu0 %v2769
      %v2888 = vpop.f32.mrf.mxu0
      %v2889 = vadd.f32 %v2758, %v2888
      %v2890 = vpop.f32.mrf.mxu0
      %2891 = vmatprep.mubr.f32.mxu0 0.0
      %2892 = vmatmul.mubr.f32.gmra.mxu0 %v2772
      %v2893 = vpop.f32.mrf.mxu0
      %v2894 = vadd.f32 %v2758, %v2893
      %v2895 = vpop.f32.mrf.mxu0
      %2896 = vmatprep.mubr.f32.mxu0 0.0
      %2897 = vmatmul.mubr.f32.gmra.mxu0 %v2775
      %v2898 = vpop.f32.mrf.mxu0
      %v2899 = vadd.f32 %v2758, %v2898
      %v2900 = vpop.f32.mrf.mxu0
      %2901 = vmatprep.mubr.f32.mxu0 0.0
      %2902 = vmatmul.mubr.f32.gmra.mxu0 %v2778
      %v2903 = vpop.f32.mrf.mxu0
      %v2904 = vadd.f32 %v2758, %v2903
      %v2905 = vpop.f32.mrf.mxu0
      %2906 = vmatprep.mubr.f32.mxu0 0.0
      %2907 = vmatmul.mubr.f32.gmra.mxu0 %v2781
      %v2908 = vpop.f32.mrf.mxu0
      %v2909 = vadd.f32 %v2758, %v2908
      %v2910 = vpop.f32.mrf.mxu0
      %2911 = vmatprep.mubr.f32.mxu0 0.0
      %2912 = vmatmul.mubr.f32.gmra.mxu0 %v2784
      %v2913 = vpop.f32.mrf.mxu0
      %v2914 = vadd.f32 %v2758, %v2913
      %v2915 = vpop.f32.mrf.mxu0
      %2916 = vmatprep.mubr.f32.mxu0 0.0
      %2917 = vmatmul.mubr.f32.gmra.mxu0 %v2787
      %v2918 = vpop.f32.mrf.mxu0
      %v2919 = vadd.f32 %v2758, %v2918
      %v2920 = vpop.f32.mrf.mxu0
      %2921 = vmatprep.mubr.f32.mxu0 0.0
      %2922 = vmatmul.mubr.f32.gmra.mxu0 %v2790
      %v2923 = vpop.f32.mrf.mxu0
      %v2924 = vadd.f32 %v2758, %v2923
      %v2925 = vpop.f32.mrf.mxu0
      %2926 = vmatprep.mubr.f32.mxu0 0.0
      %2927 = vmatmul.mubr.f32.gmra.mxu0 %v2793
      %v2928 = vpop.f32.mrf.mxu0
      %v2929 = vadd.f32 %v2758, %v2928
      %v2930 = vpop.f32.mrf.mxu0
      %2931 = vmatprep.mubr.f32.mxu0 0.0
      %2932 = vmatmul.mubr.f32.gmra.mxu0 %v2796
      %v2933 = vpop.f32.mrf.mxu0
      %v2934 = vadd.f32 %v2758, %v2933
      %v2935 = vpop.f32.mrf.mxu0
      %2936 = vmatprep.mubr.f32.mxu0 0.0
      %2937 = vmatmul.mubr.f32.gmra.mxu0 %v2799
      %v2938 = vpop.f32.mrf.mxu0
      %v2939 = vadd.f32 %v2758, %v2938
      %v2940 = vpop.f32.mrf.mxu0
      %2941 = vmatprep.mubr.f32.mxu0 0.0
      %2942 = vmatmul.mubr.f32.gmra.mxu0 %v2802
      %v2943 = vpop.f32.mrf.mxu0
      %v2944 = vadd.f32 %v2758, %v2943
      %v2945 = vpop.f32.mrf.mxu0
      %2946 = vmatprep.mubr.f32.mxu0 0.0
      %2947 = vmatmul.mubr.f32.gmra.mxu0 %v2805
      %v2948 = vpop.f32.mrf.mxu0
      %v2949 = vadd.f32 %v2758, %v2948
      %v2950 = vpop.f32.mrf.mxu0
      %2951 = vdwg.mxu0
      %v2952 = vadd.f32 %v2291, %v2874
      %v2953 = vadd.f32 %v2292, %v2879
      %v2954 = vadd.f32 %v2293, %v2884
      %v2955 = vadd.f32 %v2294, %v2889
      %v2956 = vadd.f32 %v2295, %v2894
      %v2957 = vadd.f32 %v2296, %v2899
      %v2958 = vadd.f32 %v2297, %v2904
      %v2959 = vadd.f32 %v2298, %v2909
      %v2960 = vadd.f32 %v2299, %v2914
      %v2961 = vadd.f32 %v2300, %v2919
      %v2962 = vadd.f32 %v2301, %v2924
      %v2963 = vadd.f32 %v2302, %v2929
      %v2964 = vadd.f32 %v2303, %v2934
      %v2965 = vadd.f32 %v2304, %v2939
      %v2966 = vadd.f32 %v2305, %v2944
      %v2967 = vadd.f32 %v2306, %v2949
      %v2968 = vld [vmem:[%s7] sm:$0x1]
      %v2970 = vlaneseq
      %v2971 = vshrl.u32 %v2970, 7
      %v2972 = vsub.s32 0, %v2971
      %v2973 = vrot.slane %v2968, %v2972
      %v2975 = vmul.f32 %v2952, %v2973
      %v2976 = vmul.f32 %v2953, %v2973
      %v2977 = vmul.f32 %v2954, %v2973
      %v2978 = vmul.f32 %v2955, %v2973
      %v2979 = vmul.f32 %v2956, %v2973
      %v2980 = vmul.f32 %v2957, %v2973
      %v2981 = vmul.f32 %v2958, %v2973
      %v2982 = vmul.f32 %v2959, %v2973
      %v2983 = vmul.f32 %v2960, %v2973
      %v2984 = vmul.f32 %v2961, %v2973
      %v2985 = vmul.f32 %v2962, %v2973
      %v2986 = vmul.f32 %v2963, %v2973
      %v2987 = vmul.f32 %v2964, %v2973
      %v2988 = vmul.f32 %v2965, %v2973
      %v2989 = vmul.f32 %v2966, %v2973
      %v2990 = vmul.f32 %v2967, %v2973
      %v2991 = vmul.f32 %v2975, %v2975
      %v2992 = vmul.f32 %v2976, %v2976
      %v2993 = vmul.f32 %v2977, %v2977
      %v2994 = vmul.f32 %v2978, %v2978
      %v2995 = vmul.f32 %v2979, %v2979
      %v2996 = vmul.f32 %v2980, %v2980
      %v2997 = vmul.f32 %v2981, %v2981
      %v2998 = vmul.f32 %v2982, %v2982
      %v2999 = vmul.f32 %v2983, %v2983
      %v3000 = vmul.f32 %v2984, %v2984
      %v3001 = vmul.f32 %v2985, %v2985
      %v3002 = vmul.f32 %v2986, %v2986
      %v3003 = vmul.f32 %v2987, %v2987
      %v3004 = vmul.f32 %v2988, %v2988
      %v3005 = vmul.f32 %v2989, %v2989
      %v3006 = vmul.f32 %v2990, %v2990
      %v3007 = vsel %vm338, %v2991, 0.0
      %3008 = vadd.xlane.f32.xlu0 %v3007
      %v3009 = vpop.xlane.xlu0 %3008
      %v3010 = vsel %vm338, %v2992, 0.0
      %3011 = vadd.xlane.f32.xlu0 %v3010
      %v3012 = vpop.xlane.xlu0 %3011
      %v3013 = vsel %vm338, %v2993, 0.0
      %3014 = vadd.xlane.f32.xlu0 %v3013
      %v3015 = vpop.xlane.xlu0 %3014
      %v3016 = vsel %vm338, %v2994, 0.0
      %3017 = vadd.xlane.f32.xlu0 %v3016
      %v3018 = vpop.xlane.xlu0 %3017
      %v3019 = vsel %vm338, %v2995, 0.0
      %3020 = vadd.xlane.f32.xlu0 %v3019
      %v3021 = vpop.xlane.xlu0 %3020
      %v3022 = vsel %vm338, %v2996, 0.0
      %3023 = vadd.xlane.f32.xlu0 %v3022
      %v3024 = vpop.xlane.xlu0 %3023
      %v3025 = vsel %vm338, %v2997, 0.0
      %3026 = vadd.xlane.f32.xlu0 %v3025
      %v3027 = vpop.xlane.xlu0 %3026
      %v3028 = vsel %vm338, %v2998, 0.0
      %3029 = vadd.xlane.f32.xlu0 %v3028
      %v3030 = vpop.xlane.xlu0 %3029
      %v3031 = vsel %vm338, %v2999, 0.0
      %3032 = vadd.xlane.f32.xlu0 %v3031
      %v3033 = vpop.xlane.xlu0 %3032
      %v3034 = vsel %vm338, %v3000, 0.0
      %3035 = vadd.xlane.f32.xlu0 %v3034
      %v3036 = vpop.xlane.xlu0 %3035
      %v3037 = vsel %vm338, %v3001, 0.0
      %3038 = vadd.xlane.f32.xlu0 %v3037
      %v3039 = vpop.xlane.xlu0 %3038
      %v3040 = vsel %vm338, %v3002, 0.0
      %3041 = vadd.xlane.f32.xlu0 %v3040
      %v3042 = vpop.xlane.xlu0 %3041
      %v3043 = vsel %vm338, %v3003, 0.0
      %3044 = vadd.xlane.f32.xlu0 %v3043
      %v3045 = vpop.xlane.xlu0 %3044
      %v3046 = vsel %vm338, %v3004, 0.0
      %3047 = vadd.xlane.f32.xlu0 %v3046
      %v3048 = vpop.xlane.xlu0 %3047
      %v3049 = vsel %vm338, %v3005, 0.0
      %3050 = vadd.xlane.f32.xlu0 %v3049
      %v3051 = vpop.xlane.xlu0 %3050
      %v3052 = vsel %vm338, %v3006, 0.0
      %3053 = vadd.xlane.f32.xlu0 %v3052
      %v3054 = vpop.xlane.xlu0 %3053
      %v3055 = vmul.f32 %v3009, -0.5
      %v3056 = vmul.f32 %v3012, -0.5
      %v3057 = vmul.f32 %v3015, -0.5
      %v3058 = vmul.f32 %v3018, -0.5
      %v3059 = vmul.f32 %v3021, -0.5
      %v3060 = vmul.f32 %v3024, -0.5
      %v3061 = vmul.f32 %v3027, -0.5
      %v3062 = vmul.f32 %v3030, -0.5
      %v3063 = vmul.f32 %v3033, -0.5
      %v3064 = vmul.f32 %v3036, -0.5
      %v3065 = vmul.f32 %v3039, -0.5
      %v3066 = vmul.f32 %v3042, -0.5
      %v3067 = vmul.f32 %v3045, -0.5
      %v3068 = vmul.f32 %v3048, -0.5
      %v3069 = vmul.f32 %v3051, -0.5
      %v3070 = vmul.f32 %v3054, -0.5
      %vm3071 = vcmask 7168
      %3072 = vst.msk [vmem:[%s307] sm:$0xff] %vm3071, %v3055
      %3073 = vst.msk [vmem:[%s307 + $0x8] sm:$0xff] %vm3071, %v3056
      %3074 = vst.msk [vmem:[%s307 + $0x10] sm:$0xff] %vm3071, %v3057
      %3075 = vst.msk [vmem:[%s307 + $0x18] sm:$0xff] %vm3071, %v3058
      %3076 = vst.msk [vmem:[%s307 + $0x20] sm:$0xff] %vm3071, %v3059
      %3077 = vst.msk [vmem:[%s307 + $0x28] sm:$0xff] %vm3071, %v3060
      %3078 = vst.msk [vmem:[%s307 + $0x30] sm:$0xff] %vm3071, %v3061
      %3079 = vst.msk [vmem:[%s307 + $0x38] sm:$0xff] %vm3071, %v3062
      %3080 = vst.msk [vmem:[%s307 + $0x40] sm:$0xff] %vm3071, %v3063
      %3081 = vst.msk [vmem:[%s307 + $0x48] sm:$0xff] %vm3071, %v3064
      %3082 = vst.msk [vmem:[%s307 + $0x50] sm:$0xff] %vm3071, %v3065
      %3083 = vst.msk [vmem:[%s307 + $0x58] sm:$0xff] %vm3071, %v3066
      %3084 = vst.msk [vmem:[%s307 + $0x60] sm:$0xff] %vm3071, %v3067
      %3085 = vst.msk [vmem:[%s307 + $0x68] sm:$0xff] %vm3071, %v3068
      %3086 = vst.msk [vmem:[%s307 + $0x70] sm:$0xff] %vm3071, %v3069
      %3087 = vst.msk [vmem:[%s307 + $0x78] sm:$0xff] %vm3071, %v3070
      %s3088 = smul.u32 16, %s19
      %p3089 = scmp.lt.s32.totalorder %s3088, 63
      %s3090 = scalar_select %p3089, %s3088, 63
      %s3091 = smul.addr %s3090, 8
      %s3092 = scalar_lea.vmem %s8, %s3091
      // Predicated region
      $region53: #{nice_forward_pallas.1} parent=51 // pred_check
        %p3093 = pneg %p210
      $region54: #{nice_forward_pallas.1} parent=51 // pred_check_branch
        %3095 = sbr.rel (%p3093) target = $region56
      $region55: #{nice_forward_pallas.1} parent=51 // pred_region
        %s3096 = smul.u32 16, %s19
      $region56: #{nice_forward_pallas.1} parent=51 // pred_fallthru
        _
    $region52: #{nice_forward_pallas.1} parent=5 // pred_fallthru
      _
    %p3097 = scmp.le.s32.totalorder 2, %s14
    // Predicated region
    $region57: #{nice_forward_pallas.1} parent=5 // pred_check
      %p3098 = pneg %p3097
    $region58: #{nice_forward_pallas.1} parent=5 // pred_check_branch
      %3100 = sbr.rel (%p3098) target = $region60
    $region59: #{nice_forward_pallas.1} parent=5 // pred_region
      %s3101 = ssub.s32 %s14, 2
      // Predicated region
      $region61: #{nice_forward_pallas.1} parent=59 // pred_check
        %p3102 = pneg %p216
      $region62: #{nice_forward_pallas.1} parent=59 // pred_check_branch
        %3104 = sbr.rel (%p3102) target = $region64
      $region63: #{nice_forward_pallas.1} parent=59 // pred_region
        %s3105 = smul.u32 16, %s20
        %p3106 = scmp.lt.s32.totalorder %s3105, 63
        %s3107 = scalar_select %p3106, %s3105, 63
        %s3108 = smul.addr %s3107, 8
        %s3109 = scalar_lea.vmem %s8, %s3108
      $region64: #{nice_forward_pallas.1} parent=59 // pred_fallthru
        _
    $region60: #{nice_forward_pallas.1} parent=5 // pred_fallthru
      _
  $region6: #{nice_forward_pallas.1} parent=0 // loop_footer
    %s18 = sadd.s32 1, %s14
  $region7: #{nice_forward_pallas.1} parent=0 // loop_footer_branch
    %13 = sbr.rel target = $region3
  $region8: #{nice_forward_pallas.1} parent=0 // loop_exit
    _

</llo_original>
